<compile_context>
chip_gen: v6e
topology: v6e:2x2x1
jax: 0.10.0
libtpu: 0.0.40
codegen_flags: <defaults>
</compile_context>

<pallas_src>
import math
from functools import partial

import jax
import jax.numpy as jnp
from jax import lax
from jax.experimental import pallas as pl
from jax.experimental.pallas import tpu as pltpu


def _round_up(x, m):
    return ((x + m - 1) // m) * m


def _vmem_budget_bytes():
    """Generation-aware VMEM budgets (falls back if the hardware query fails)."""
    try:
        cap = int(pltpu.get_tpu_info().vmem_capacity_bytes)
    except Exception:
        cap = 0
    if cap <= 0:
        cap = 64 * 1024 * 1024            # conservative default (v7x per-core VMEM)
    headroom = max(8 * 1024 * 1024, cap // 8)
    limit = cap - headroom                # vmem_limit_bytes handed to Mosaic
    budget = limit // 2                   # per-tile working-set target
    return budget, limit


def _pick_row_tile(H, W, Cp, Hp, Cop, row_tile_cap, budget_bytes):
    """Largest divisor of H whose fused band footprint fits the VMEM budget.

    Counts: double-buffered x / out bands, the (th+2,W,Hp) f32 hidden scratch,
    conv/GELU temporaries, bf16 matmul operand copies, f32 fc2 result, and the
    resident bf16 weights / f32 taps+biases.
    """
    fixed = (Cp * Hp + Hp * Cop) * 2 + (9 * Hp + 2 * Hp + Cop) * 4
    per_row = W * (
        2 * Cp * 4            # x band (double buffered)
        + 2 * Cop * 4         # out band (double buffered)
        + Hp * 4              # h scratch
        + 4 * Hp * 4          # dx accumulators + shifted copies / GELU temp
        + Hp * 2 + Cp * 2     # bf16 matmul operand copies
        + Cop * 4             # f32 fc2 result
    )
    avail = max(budget_bytes - fixed, per_row)
    th_max = max(1, min(H, avail // per_row))
    if row_tile_cap is not None:
        th_max = min(th_max, max(1, row_tile_cap))
    divisors = [t for t in range(int(th_max), 0, -1) if H % t == 0]
    best = divisors[0]
    for t in divisors:                    # prefer th*W multiple of 16 (bf16 MXU rows)
        if (t * W) % 16 == 0 and 2 * t >= best:
            return t
    return best


# --------------------- fused fc1 + dwconv + GELU + fc2 --------------------- #
def _fused_mlp_kernel(x_c_ref, x_u_ref, x_d_ref,
                      w1_ref, b1_ref, wdw_ref, bdw_ref, w2_ref, b2_ref,
                      o_ref, h_ref, *, th, W, approximate_gelu):
    """One (batch, row-band) tile.

    x_c_ref: (1, th, W, Cp)  rows [i*th, i*th+th)
    x_u_ref: (1, 1,  W, Cp)  row  i*th-1  (clamped; zeroed in h when i == 0)
    x_d_ref: (1, 1,  W, Cp)  row  i*th+th (clamped; zeroed in h when i == last)
    h_ref  : (th+2, W, Hp) f32 scratch holding fc1 output incl. 1-row halo.
    """
    i = pl.program_id(1)
    nb = pl.num_programs(1)
    Cp = x_c_ref.shape[-1]
    Hp = w1_ref.shape[-1]
    Cop = o_ref.shape[-1]

    w1 = w1_ref[...]                                   # bf16, resident
    b1 = b1_ref[...].astype(jnp.float32)               # (1, Hp)

    # ---- fc1 for the center band: one bf16 MXU matmul, f32 accumulate ----
    x_mat = x_c_ref[0].reshape(th * W, Cp).astype(jnp.bfloat16)
    hc = jnp.dot(x_mat, w1, preferred_element_type=jnp.float32) + b1
    h_ref[pl.ds(1, th)] = hc.reshape(th, W, Hp)

    # ---- fc1 recomputed for the 1-row halos; zeros outside the image ----
    @pl.when(i > 0)
    def _():
        xt = x_u_ref[0].reshape(W, Cp).astype(jnp.bfloat16)
        h_ref[0] = jnp.dot(xt, w1, preferred_element_type=jnp.float32) + b1

    @pl.when(i == 0)
    def _():
        h_ref[0] = jnp.zeros((W, Hp), jnp.float32)

    @pl.when(i < nb - 1)
    def _():
        xb = x_d_ref[0].reshape(W, Cp).astype(jnp.bfloat16)
        h_ref[th + 1] = jnp.dot(xb, w1, preferred_element_type=jnp.float32) + b1

    @pl.when(i == nb - 1)
    def _():
        h_ref[th + 1] = jnp.zeros((W, Hp), jnp.float32)

    # ---- depthwise 3x3 conv ----
    # Accumulate per-dx sums over dy first (linearity), then apply ONE
    # zero-padded shift per horizontal neighbour.
    taps = wdw_ref[...].astype(jnp.float32)             # (3, 3, Hp)
    left_acc = ctr_acc = right_acc = None
    for dy in range(3):
        rows = h_ref[pl.ds(dy, th)]                      # (th, W, Hp)
        l = rows * taps[dy, 0].reshape(1, 1, Hp)
        c = rows * taps[dy, 1].reshape(1, 1, Hp)
        r = rows * taps[dy, 2].reshape(1, 1, Hp)
        if dy == 0:
            left_acc, ctr_acc, right_acc = l, c, r
        else:
            left_acc = left_acc + l
            ctr_acc = ctr_acc + c
            right_acc = right_acc + r
    zcol = jnp.zeros((th, 1, Hp), jnp.float32)
    left_sh = jnp.concatenate([zcol, left_acc[:, :W - 1, :]], axis=1)   # col c <- c-1
    right_sh = jnp.concatenate([right_acc[:, 1:, :], zcol], axis=1)     # col c <- c+1
    acc = (ctr_acc + left_sh + right_sh
           + bdw_ref[...].astype(jnp.float32).reshape(1, 1, Hp))

    # ---- GELU (exact erf by default, matching torch nn.GELU) ----
    if approximate_gelu:
        g = jax.nn.gelu(acc, approximate=True)          # EUP-friendly tanh form
    else:
        g = 0.5 * acc * (1.0 + lax.erf(acc * jnp.float32(1.0 / math.sqrt(2.0))))

    # ---- fc2 ----
    g_mat = g.reshape(th * W, Hp).astype(jnp.bfloat16)
    y = jnp.dot(g_mat, w2_ref[...], preferred_element_type=jnp.float32)
    y = y + b2_ref[...].astype(jnp.float32)
    o_ref[0] = y.reshape(th, W, Cop).astype(o_ref.dtype)


# ------------------------------- Mlp forward ------------------------------- #
def mlp_forward(x, params, H, W, *, row_tile=None, lane_multiple=128,
                approximate_gelu=False):
    """x: (B, N, C_in) with N == H*W, returns (B, N, C_out)."""
    w1, b1, wdw, bdw, w2, b2 = params
    B, N, Cin = x.shape
    assert N == H * W
    hidden = w1.shape[1]
    Cout = w2.shape[1]

    # Lane-dense channel padding (no-op when already multiples of 128).
    Cp = _round_up(Cin, lane_multiple)
    Hp = _round_up(hidden, lane_multiple)
    Cop = _round_up(Cout, lane_multiple)

    xp = x.reshape(B, H, W, Cin)
    if Cp != Cin:
        xp = jnp.pad(xp, ((0, 0), (0, 0), (0, 0), (0, Cp - Cin)))
    w1p = jnp.pad(w1, ((0, Cp - Cin), (0, Hp - hidden))).astype(jnp.bfloat16)
    b1p = jnp.pad(b1, (0, Hp - hidden)).reshape(1, Hp)
    wdwp = jnp.pad(wdw, ((0, 0), (0, 0), (0, Hp - hidden)))
    bdwp = jnp.pad(bdw, (0, Hp - hidden)).reshape(1, Hp)
    w2p = jnp.pad(w2, ((0, Hp - hidden), (0, Cop - Cout))).astype(jnp.bfloat16)
    b2p = jnp.pad(b2, (0, Cop - Cout)).reshape(1, Cop)

    budget, vmem_limit = _vmem_budget_bytes()
    th = _pick_row_tile(H, W, Cp, Hp, Cop, row_tile, budget)
    nb = H // th

    kernel = partial(_fused_mlp_kernel, th=th, W=W,
                     approximate_gelu=approximate_gelu)

    out = pl.pallas_call(
        kernel,
        out_shape=jax.ShapeDtypeStruct((B, H, W, Cop), x.dtype),
        grid=(B, nb),
        in_specs=[
            # center band of x
            pl.BlockSpec((1, th, W, Cp), lambda b, i: (b, i, 0, 0)),
            # 1-row halo above (row block size 1 -> block index == row index)
            pl.BlockSpec((1, 1, W, Cp),
                         lambda b, i: (b, jnp.maximum(i * th - 1, 0), 0, 0)),
            # 1-row halo below
            pl.BlockSpec((1, 1, W, Cp),
                         lambda b, i: (b, jnp.minimum(i * th + th, H - 1), 0, 0)),
            # weights / biases: constant block index -> stay resident in VMEM
            pl.BlockSpec((Cp, Hp), lambda b, i: (0, 0)),
            pl.BlockSpec((1, Hp), lambda b, i: (0, 0)),
            pl.BlockSpec((3, 3, Hp), lambda b, i: (0, 0, 0)),
            pl.BlockSpec((1, Hp), lambda b, i: (0, 0)),
            pl.BlockSpec((Hp, Cop), lambda b, i: (0, 0)),
            pl.BlockSpec((1, Cop), lambda b, i: (0, 0)),
        ],
        out_specs=pl.BlockSpec((1, th, W, Cop), lambda b, i: (b, i, 0, 0)),
        scratch_shapes=[pltpu.VMEM((th + 2, W, Hp), jnp.float32)],
        compiler_params=pltpu.CompilerParams(
            dimension_semantics=("parallel", "parallel"),
            vmem_limit_bytes=int(vmem_limit),
        ),
    )(xp, xp, xp, w1p, b1p, wdwp, bdwp, w2p, b2p)

    if Cop != Cout:
        out = out[..., :Cout]
    return out.reshape(B, N, Cout)


# -------------------------- Pure-JAX reference ----------------------------- #
def mlp_reference(x, params, H, W):
    w1, b1, wdw, bdw, w2, b2 = params
    B, N, Cin = x.shape
    hidden = w1.shape[1]
    h = x @ w1 + b1
    h_img = h.reshape(B, H, W, hidden)
    hp = jnp.pad(h_img, ((0, 0), (1, 1), (1, 1), (0, 0)))
    acc = jnp.zeros_like(h_img)
    for dy in range(3):
        for dx in range(3):
            acc = acc + hp[:, dy:dy + H, dx:dx + W, :] * wdw[dy, dx, :]
    acc = acc + bdw
    g = jax.nn.gelu(acc, approximate=False)
    return g.reshape(B, N, hidden) @ w2 + b2


# ----------------------------------- Main ----------------------------------- #
if __name__ == "__main__":
    # Small shapes consistent with the module: (B, N=H*W, in_features).
    B, H, W = 2, 16, 8
    N = H * W
    in_features, hidden_features, out_features = 16, 32, 16

    key = jax.random.PRNGKey(0)
    kx, k1, k2, k3 = jax.random.split(key, 4)

    # Deterministic synthetic parameters (shapes per Mlp.__init__ / _init_weights).
    w1 = jax.random.normal(k1, (in_features, hidden_features), jnp.float32) * 0.02
    b1 = jnp.zeros((hidden_features,), jnp.float32)
    fan_out = 3 * 3 * hidden_features // hidden_features  # groups == dim -> 9
    wdw = (jax.random.normal(k2, (3, 3, hidden_features), jnp.float32)
           * math.sqrt(2.0 / fan_out))                     # (kh, kw, C) depthwise taps
    bdw = jnp.zeros((hidden_features,), jnp.float32)
    w2 = jax.random.normal(k3, (hidden_features, out_features), jnp.float32) * 0.02
    b2 = jnp.zeros((out_features,), jnp.float32)
    params = (w1, b1, wdw, bdw, w2, b2)

    x = jax.random.normal(kx, (B, N, in_features), jnp.float32)

    # row_tile=8 -> two row bands, so the cross-band halo path is exercised.
    out = mlp_forward(x, params, H, W, row_tile=8)
    out = jax.block_until_ready(out)

    ref = mlp_reference(x, params, H, W)
    assert out.shape == (B, N, out_features)
    # bf16 MXU inputs with f32 accumulation -> slightly looser tolerance.
    assert jnp.allclose(out, ref, atol=3e-3, rtol=3e-2), "mismatch vs reference"

    print("KERNEL_OK")
</pallas_src>

<mosaic_0001>
module attributes {stable_mosaic.version = 11 : i64} {
  func.func @_fused_mlp_kernel(%arg0: i32, %arg1: i32, %arg2: memref<1x8x8x128xf32, #tpu.memory_space<vmem>>, %arg3: memref<1x1x8x128xf32, #tpu.memory_space<vmem>>, %arg4: memref<1x1x8x128xf32, #tpu.memory_space<vmem>>, %arg5: memref<128x128xbf16, #tpu.memory_space<vmem>>, %arg6: memref<1x128xf32, #tpu.memory_space<vmem>>, %arg7: memref<3x3x128xf32, #tpu.memory_space<vmem>>, %arg8: memref<1x128xf32, #tpu.memory_space<vmem>>, %arg9: memref<128x128xbf16, #tpu.memory_space<vmem>>, %arg10: memref<1x128xf32, #tpu.memory_space<vmem>>, %arg11: memref<1x8x8x128xf32, #tpu.memory_space<vmem>>, %arg12: memref<10x8x128xf32, #tpu.memory_space<vmem>>) attributes {dimension_semantics = [#tpu.dimension_semantics<parallel>, #tpu.dimension_semantics<parallel>], iteration_bounds = array<i64: 2, 2>, scalar_prefetch = 0 : i64, scratch_operands = 1 : i64, tpu.core_type = #tpu.core_type<tc>, window_params = [{transform_indices = @transform_0, window_bounds = array<i64: 1, 8, 8, 128>}, {transform_indices = @transform_1, window_bounds = array<i64: 1, 1, 8, 128>}, {transform_indices = @transform_2, window_bounds = array<i64: 1, 1, 8, 128>}, {pipeline_mode = #tpu.pipeline_mode<synchronous>, transform_indices = @transform_3, window_bounds = array<i64: 128, 128>}, {pipeline_mode = #tpu.pipeline_mode<synchronous>, transform_indices = @transform_4, window_bounds = array<i64: 1, 128>}, {pipeline_mode = #tpu.pipeline_mode<synchronous>, transform_indices = @transform_5, window_bounds = array<i64: 3, 3, 128>}, {pipeline_mode = #tpu.pipeline_mode<synchronous>, transform_indices = @transform_6, window_bounds = array<i64: 1, 128>}, {pipeline_mode = #tpu.pipeline_mode<synchronous>, transform_indices = @transform_7, window_bounds = array<i64: 128, 128>}, {pipeline_mode = #tpu.pipeline_mode<synchronous>, transform_indices = @transform_8, window_bounds = array<i64: 1, 128>}, {transform_indices = @transform_9, window_bounds = array<i64: 1, 8, 8, 128>}]} {
    %c0 = arith.constant 0 : index
    %c0_0 = arith.constant 0 : index
    %0 = vector.load %arg5[%c0, %c0_0] : memref<128x128xbf16, #tpu.memory_space<vmem>>, vector<128x128xbf16>
    %c0_1 = arith.constant 0 : index
    %c0_2 = arith.constant 0 : index
    %1 = vector.load %arg6[%c0_1, %c0_2] : memref<1x128xf32, #tpu.memory_space<vmem>>, vector<1x128xf32>
    %c0_3 = arith.constant 0 : index
    %c0_4 = arith.constant 0 : index
    %c0_5 = arith.constant 0 : index
    %c0_6 = arith.constant 0 : index
    %2 = vector.load %arg2[%c0_3, %c0_4, %c0_5, %c0_6] : memref<1x8x8x128xf32, #tpu.memory_space<vmem>>, vector<1x8x8x128xf32>
    %3 = vector.shape_cast %2 : vector<1x8x8x128xf32> to vector<8x8x128xf32>
    %4 = vector.shape_cast %3 : vector<8x8x128xf32> to vector<64x128xf32>
    %5 = arith.truncf %4 : vector<64x128xf32> to vector<64x128xbf16>
    %cst = arith.constant dense<0.000000e+00> : vector<64x128xf32>
    %6 = tpu.matmul %5, %0, %cst {dimension_numbers = #tpu.dot_dimension_numbers<[1], [0], [0], [1], [0, 0, 1, 1], [], []>} : vector<64x128xbf16>, vector<128x128xbf16>, vector<64x128xf32> -> vector<64x128xf32>
    %7 = vector.broadcast %1 : vector<1x128xf32> to vector<64x128xf32>
    %8 = arith.addf %6, %7 : vector<64x128xf32>
    %9 = vector.shape_cast %8 : vector<64x128xf32> to vector<8x8x128xf32>
    %c1 = arith.constant 1 : index
    %c0_7 = arith.constant 0 : index
    %c0_8 = arith.constant 0 : index
    %10 = vector.load %arg12[%c1, %c0_7, %c0_8] : memref<10x8x128xf32, #tpu.memory_space<vmem>>, vector<8x8x128xf32>
    tpu.vector_store %arg12[%c1, %c0_7, %c0_8], %9 {strides = array<i32>} : memref<10x8x128xf32, #tpu.memory_space<vmem>>, vector<8x8x128xf32>,
    %c0_i32 = arith.constant 0 : i32
    %11 = arith.cmpi sgt, %arg1, %c0_i32 : i32
    %12 = arith.extui %11 : i1 to i32
    %c0_i32_9 = arith.constant 0 : i32
    %13 = arith.cmpi ne, %12, %c0_i32_9 : i32
    scf.if %13 {
      %c0_41 = arith.constant 0 : index
      %c0_42 = arith.constant 0 : index
      %c0_43 = arith.constant 0 : index
      %c0_44 = arith.constant 0 : index
      %108 = vector.load %arg3[%c0_41, %c0_42, %c0_43, %c0_44] : memref<1x1x8x128xf32, #tpu.memory_space<vmem>>, vector<1x1x8x128xf32>
      %109 = vector.shape_cast %108 : vector<1x1x8x128xf32> to vector<1x8x128xf32>
      %110 = vector.shape_cast %109 : vector<1x8x128xf32> to vector<8x128xf32>
      %111 = arith.truncf %110 : vector<8x128xf32> to vector<8x128xbf16>
      %cst_45 = arith.constant dense<0.000000e+00> : vector<8x128xf32>
      %112 = tpu.matmul %111, %0, %cst_45 {dimension_numbers = #tpu.dot_dimension_numbers<[1], [0], [0], [1], [0, 0, 1, 1], [], []>} : vector<8x128xbf16>, vector<128x128xbf16>, vector<8x128xf32> -> vector<8x128xf32>
      %113 = vector.broadcast %1 : vector<1x128xf32> to vector<8x128xf32>
      %114 = arith.addf %112, %113 : vector<8x128xf32>
      %c0_46 = arith.constant 0 : index
      %c0_47 = arith.constant 0 : index
      %c0_48 = arith.constant 0 : index
      %115 = vector.load %arg12[%c0_46, %c0_47, %c0_48] : memref<10x8x128xf32, #tpu.memory_space<vmem>>, vector<1x8x128xf32>
      %116 = vector.shape_cast %115 : vector<1x8x128xf32> to vector<8x128xf32>
      %117 = vector.shape_cast %114 : vector<8x128xf32> to vector<1x8x128xf32>
      tpu.vector_store %arg12[%c0_46, %c0_47, %c0_48], %117 {strides = array<i32>} : memref<10x8x128xf32, #tpu.memory_space<vmem>>, vector<1x8x128xf32>,
    } else {
    }
    %c0_i32_10 = arith.constant 0 : i32
    %14 = arith.cmpi eq, %arg1, %c0_i32_10 : i32
    %15 = arith.extui %14 : i1 to i32
    %c0_i32_11 = arith.constant 0 : i32
    %16 = arith.cmpi ne, %15, %c0_i32_11 : i32
    scf.if %16 {
      %cst_41 = arith.constant 0.000000e+00 : f32
      %108 = vector.broadcast %cst_41 : f32 to vector<8x128xf32>
      %c0_42 = arith.constant 0 : index
      %c0_43 = arith.constant 0 : index
      %c0_44 = arith.constant 0 : index
      %109 = vector.load %arg12[%c0_42, %c0_43, %c0_44] : memref<10x8x128xf32, #tpu.memory_space<vmem>>, vector<1x8x128xf32>
      %110 = vector.shape_cast %109 : vector<1x8x128xf32> to vector<8x128xf32>
      %111 = vector.shape_cast %108 : vector<8x128xf32> to vector<1x8x128xf32>
      tpu.vector_store %arg12[%c0_42, %c0_43, %c0_44], %111 {strides = array<i32>} : memref<10x8x128xf32, #tpu.memory_space<vmem>>, vector<1x8x128xf32>,
    } else {
    }
    %c1_i32 = arith.constant 1 : i32
    %17 = arith.cmpi slt, %arg1, %c1_i32 : i32
    %18 = arith.extui %17 : i1 to i32
    %c0_i32_12 = arith.constant 0 : i32
    %19 = arith.cmpi ne, %18, %c0_i32_12 : i32
    scf.if %19 {
      %c0_41 = arith.constant 0 : index
      %c0_42 = arith.constant 0 : index
      %c0_43 = arith.constant 0 : index
      %c0_44 = arith.constant 0 : index
      %108 = vector.load %arg4[%c0_41, %c0_42, %c0_43, %c0_44] : memref<1x1x8x128xf32, #tpu.memory_space<vmem>>, vector<1x1x8x128xf32>
      %109 = vector.shape_cast %108 : vector<1x1x8x128xf32> to vector<1x8x128xf32>
      %110 = vector.shape_cast %109 : vector<1x8x128xf32> to vector<8x128xf32>
      %111 = arith.truncf %110 : vector<8x128xf32> to vector<8x128xbf16>
      %cst_45 = arith.constant dense<0.000000e+00> : vector<8x128xf32>
      %112 = tpu.matmul %111, %0, %cst_45 {dimension_numbers = #tpu.dot_dimension_numbers<[1], [0], [0], [1], [0, 0, 1, 1], [], []>} : vector<8x128xbf16>, vector<128x128xbf16>, vector<8x128xf32> -> vector<8x128xf32>
      %113 = vector.broadcast %1 : vector<1x128xf32> to vector<8x128xf32>
      %114 = arith.addf %112, %113 : vector<8x128xf32>
      %c9 = arith.constant 9 : index
      %c0_46 = arith.constant 0 : index
      %c0_47 = arith.constant 0 : index
      %115 = vector.load %arg12[%c9, %c0_46, %c0_47] : memref<10x8x128xf32, #tpu.memory_space<vmem>>, vector<1x8x128xf32>
      %116 = vector.shape_cast %115 : vector<1x8x128xf32> to vector<8x128xf32>
      %117 = vector.shape_cast %114 : vector<8x128xf32> to vector<1x8x128xf32>
      tpu.vector_store %arg12[%c9, %c0_46, %c0_47], %117 {strides = array<i32>} : memref<10x8x128xf32, #tpu.memory_space<vmem>>, vector<1x8x128xf32>,
    } else {
    }
    %c1_i32_13 = arith.constant 1 : i32
    %20 = arith.cmpi eq, %arg1, %c1_i32_13 : i32
    %21 = arith.extui %20 : i1 to i32
    %c0_i32_14 = arith.constant 0 : i32
    %22 = arith.cmpi ne, %21, %c0_i32_14 : i32
    scf.if %22 {
      %cst_41 = arith.constant 0.000000e+00 : f32
      %108 = vector.broadcast %cst_41 : f32 to vector<8x128xf32>
      %c9 = arith.constant 9 : index
      %c0_42 = arith.constant 0 : index
      %c0_43 = arith.constant 0 : index
      %109 = vector.load %arg12[%c9, %c0_42, %c0_43] : memref<10x8x128xf32, #tpu.memory_space<vmem>>, vector<1x8x128xf32>
      %110 = vector.shape_cast %109 : vector<1x8x128xf32> to vector<8x128xf32>
      %111 = vector.shape_cast %108 : vector<8x128xf32> to vector<1x8x128xf32>
      tpu.vector_store %arg12[%c9, %c0_42, %c0_43], %111 {strides = array<i32>} : memref<10x8x128xf32, #tpu.memory_space<vmem>>, vector<1x8x128xf32>,
    } else {
    }
    %c0_15 = arith.constant 0 : index
    %c0_16 = arith.constant 0 : index
    %c0_17 = arith.constant 0 : index
    %23 = vector.load %arg7[%c0_15, %c0_16, %c0_17] : memref<3x3x128xf32, #tpu.memory_space<vmem>>, vector<3x3x128xf32>
    %c0_18 = arith.constant 0 : index
    %c0_19 = arith.constant 0 : index
    %c0_20 = arith.constant 0 : index
    %24 = vector.load %arg12[%c0_18, %c0_19, %c0_20] : memref<10x8x128xf32, #tpu.memory_space<vmem>>, vector<8x8x128xf32>
    %25 = vector.extract_strided_slice %23 {offsets = [0, 0, 0], sizes = [1, 1, 128], strides = [1, 1, 1]} : vector<3x3x128xf32> to vector<1x1x128xf32>
    %26 = vector.shape_cast %25 : vector<1x1x128xf32> to vector<128xf32>
    %27 = vector.shape_cast %26 : vector<128xf32> to vector<1x1x128xf32>
    %28 = vector.broadcast %27 : vector<1x1x128xf32> to vector<8x8x128xf32>
    %29 = arith.mulf %24, %28 : vector<8x8x128xf32>
    %30 = vector.extract_strided_slice %23 {offsets = [0, 1, 0], sizes = [1, 1, 128], strides = [1, 1, 1]} : vector<3x3x128xf32> to vector<1x1x128xf32>
    %31 = vector.shape_cast %30 : vector<1x1x128xf32> to vector<128xf32>
    %32 = vector.shape_cast %31 : vector<128xf32> to vector<1x1x128xf32>
    %33 = vector.broadcast %32 : vector<1x1x128xf32> to vector<8x8x128xf32>
    %34 = arith.mulf %24, %33 : vector<8x8x128xf32>
    %35 = vector.extract_strided_slice %23 {offsets = [0, 2, 0], sizes = [1, 1, 128], strides = [1, 1, 1]} : vector<3x3x128xf32> to vector<1x1x128xf32>
    %36 = vector.shape_cast %35 : vector<1x1x128xf32> to vector<128xf32>
    %37 = vector.shape_cast %36 : vector<128xf32> to vector<1x1x128xf32>
    %38 = vector.broadcast %37 : vector<1x1x128xf32> to vector<8x8x128xf32>
    %39 = arith.mulf %24, %38 : vector<8x8x128xf32>
    %c1_21 = arith.constant 1 : index
    %c0_22 = arith.constant 0 : index
    %c0_23 = arith.constant 0 : index
    %40 = vector.load %arg12[%c1_21, %c0_22, %c0_23] : memref<10x8x128xf32, #tpu.memory_space<vmem>>, vector<8x8x128xf32>
    %41 = vector.extract_strided_slice %23 {offsets = [1, 0, 0], sizes = [1, 1, 128], strides = [1, 1, 1]} : vector<3x3x128xf32> to vector<1x1x128xf32>
    %42 = vector.shape_cast %41 : vector<1x1x128xf32> to vector<128xf32>
    %43 = vector.shape_cast %42 : vector<128xf32> to vector<1x1x128xf32>
    %44 = vector.broadcast %43 : vector<1x1x128xf32> to vector<8x8x128xf32>
    %45 = arith.mulf %40, %44 : vector<8x8x128xf32>
    %46 = vector.extract_strided_slice %23 {offsets = [1, 1, 0], sizes = [1, 1, 128], strides = [1, 1, 1]} : vector<3x3x128xf32> to vector<1x1x128xf32>
    %47 = vector.shape_cast %46 : vector<1x1x128xf32> to vector<128xf32>
    %48 = vector.shape_cast %47 : vector<128xf32> to vector<1x1x128xf32>
    %49 = vector.broadcast %48 : vector<1x1x128xf32> to vector<8x8x128xf32>
    %50 = arith.mulf %40, %49 : vector<8x8x128xf32>
    %51 = vector.extract_strided_slice %23 {offsets = [1, 2, 0], sizes = [1, 1, 128], strides = [1, 1, 1]} : vector<3x3x128xf32> to vector<1x1x128xf32>
    %52 = vector.shape_cast %51 : vector<1x1x128xf32> to vector<128xf32>
    %53 = vector.shape_cast %52 : vector<128xf32> to vector<1x1x128xf32>
    %54 = vector.broadcast %53 : vector<1x1x128xf32> to vector<8x8x128xf32>
    %55 = arith.mulf %40, %54 : vector<8x8x128xf32>
    %56 = arith.addf %29, %45 : vector<8x8x128xf32>
    %57 = arith.addf %34, %50 : vector<8x8x128xf32>
    %58 = arith.addf %39, %55 : vector<8x8x128xf32>
    %c2 = arith.constant 2 : index
    %c0_24 = arith.constant 0 : index
    %c0_25 = arith.constant 0 : index
    %59 = vector.load %arg12[%c2, %c0_24, %c0_25] : memref<10x8x128xf32, #tpu.memory_space<vmem>>, vector<8x8x128xf32>
    %60 = vector.extract_strided_slice %23 {offsets = [2, 0, 0], sizes = [1, 1, 128], strides = [1, 1, 1]} : vector<3x3x128xf32> to vector<1x1x128xf32>
    %61 = vector.shape_cast %60 : vector<1x1x128xf32> to vector<128xf32>
    %62 = vector.shape_cast %61 : vector<128xf32> to vector<1x1x128xf32>
    %63 = vector.broadcast %62 : vector<1x1x128xf32> to vector<8x8x128xf32>
    %64 = arith.mulf %59, %63 : vector<8x8x128xf32>
    %65 = vector.extract_strided_slice %23 {offsets = [2, 1, 0], sizes = [1, 1, 128], strides = [1, 1, 1]} : vector<3x3x128xf32> to vector<1x1x128xf32>
    %66 = vector.shape_cast %65 : vector<1x1x128xf32> to vector<128xf32>
    %67 = vector.shape_cast %66 : vector<128xf32> to vector<1x1x128xf32>
    %68 = vector.broadcast %67 : vector<1x1x128xf32> to vector<8x8x128xf32>
    %69 = arith.mulf %59, %68 : vector<8x8x128xf32>
    %70 = vector.extract_strided_slice %23 {offsets = [2, 2, 0], sizes = [1, 1, 128], strides = [1, 1, 1]} : vector<3x3x128xf32> to vector<1x1x128xf32>
    %71 = vector.shape_cast %70 : vector<1x1x128xf32> to vector<128xf32>
    %72 = vector.shape_cast %71 : vector<128xf32> to vector<1x1x128xf32>
    %73 = vector.broadcast %72 : vector<1x1x128xf32> to vector<8x8x128xf32>
    %74 = arith.mulf %59, %73 : vector<8x8x128xf32>
    %75 = arith.addf %56, %64 : vector<8x8x128xf32>
    %76 = arith.addf %57, %69 : vector<8x8x128xf32>
    %77 = arith.addf %58, %74 : vector<8x8x128xf32>
    %cst_26 = arith.constant 0.000000e+00 : f32
    %78 = vector.broadcast %cst_26 : f32 to vector<8x1x128xf32>
    %79 = vector.extract_strided_slice %75 {offsets = [0, 0, 0], sizes = [8, 7, 128], strides = [1, 1, 1]} : vector<8x8x128xf32> to vector<8x7x128xf32>
    %80 = tpu.concatenate %78, %79 in 1 : vector<8x1x128xf32>, vector<8x7x128xf32> -> vector<8x8x128xf32>
    %81 = vector.extract_strided_slice %77 {offsets = [0, 1, 0], sizes = [8, 7, 128], strides = [1, 1, 1]} : vector<8x8x128xf32> to vector<8x7x128xf32>
    %82 = tpu.concatenate %81, %78 in 1 : vector<8x7x128xf32>, vector<8x1x128xf32> -> vector<8x8x128xf32>
    %83 = arith.addf %76, %80 : vector<8x8x128xf32>
    %84 = arith.addf %83, %82 : vector<8x8x128xf32>
    %c0_27 = arith.constant 0 : index
    %c0_28 = arith.constant 0 : index
    %85 = vector.load %arg8[%c0_27, %c0_28] : memref<1x128xf32, #tpu.memory_space<vmem>>, vector<1x128xf32>
    %86 = vector.shape_cast %85 : vector<1x128xf32> to vector<1x1x128xf32>
    %87 = vector.broadcast %86 : vector<1x1x128xf32> to vector<8x8x128xf32>
    %88 = arith.addf %84, %87 : vector<8x8x128xf32>
    %cst_29 = arith.constant 5.000000e-01 : f32
    %89 = vector.broadcast %cst_29 : f32 to vector<8x8x128xf32>
    %90 = arith.mulf %89, %88 : vector<8x8x128xf32>
    %cst_30 = arith.constant 0.707106769 : f32
    %91 = vector.broadcast %cst_30 : f32 to vector<8x8x128xf32>
    %92 = arith.mulf %88, %91 : vector<8x8x128xf32>
    %93 = math.erf %92 : vector<8x8x128xf32>
    %cst_31 = arith.constant 1.000000e+00 : f32
    %94 = vector.broadcast %cst_31 : f32 to vector<8x8x128xf32>
    %95 = arith.addf %94, %93 : vector<8x8x128xf32>
    %96 = arith.mulf %90, %95 : vector<8x8x128xf32>
    %97 = vector.shape_cast %96 : vector<8x8x128xf32> to vector<64x128xf32>
    %98 = arith.truncf %97 : vector<64x128xf32> to vector<64x128xbf16>
    %c0_32 = arith.constant 0 : index
    %c0_33 = arith.constant 0 : index
    %99 = vector.load %arg9[%c0_32, %c0_33] : memref<128x128xbf16, #tpu.memory_space<vmem>>, vector<128x128xbf16>
    %cst_34 = arith.constant dense<0.000000e+00> : vector<64x128xf32>
    %100 = tpu.matmul %98, %99, %cst_34 {dimension_numbers = #tpu.dot_dimension_numbers<[1], [0], [0], [1], [0, 0, 1, 1], [], []>} : vector<64x128xbf16>, vector<128x128xbf16>, vector<64x128xf32> -> vector<64x128xf32>
    %c0_35 = arith.constant 0 : index
    %c0_36 = arith.constant 0 : index
    %101 = vector.load %arg10[%c0_35, %c0_36] : memref<1x128xf32, #tpu.memory_space<vmem>>, vector<1x128xf32>
    %102 = vector.broadcast %101 : vector<1x128xf32> to vector<64x128xf32>
    %103 = arith.addf %100, %102 : vector<64x128xf32>
    %104 = vector.shape_cast %103 : vector<64x128xf32> to vector<8x8x128xf32>
    %c0_37 = arith.constant 0 : index
    %c0_38 = arith.constant 0 : index
    %c0_39 = arith.constant 0 : index
    %c0_40 = arith.constant 0 : index
    %105 = vector.load %arg11[%c0_37, %c0_38, %c0_39, %c0_40] : memref<1x8x8x128xf32, #tpu.memory_space<vmem>>, vector<1x8x8x128xf32>
    %106 = vector.shape_cast %105 : vector<1x8x8x128xf32> to vector<8x8x128xf32>
    %107 = vector.shape_cast %104 : vector<8x8x128xf32> to vector<1x8x8x128xf32>
    tpu.vector_store %arg11[%c0_37, %c0_38, %c0_39, %c0_40], %107 {strides = array<i32>} : memref<1x8x8x128xf32, #tpu.memory_space<vmem>>, vector<1x8x8x128xf32>,
    return
  }
  func.func @transform_0(%arg0: i32, %arg1: i32) -> (i32, i32, i32, i32) {
    %c0_i32 = arith.constant 0 : i32
    %c0_i32_0 = arith.constant 0 : i32
    %c0_i32_1 = arith.constant 0 : i32
    return %arg0, %arg1, %c0_i32, %c0_i32_0 : i32, i32, i32, i32
  }
  func.func @transform_1(%arg0: i32, %arg1: i32) -> (i32, i32, i32, i32) {
    %c8_i32 = arith.constant 8 : i32
    %0 = arith.muli %arg1, %c8_i32 : i32
    %c1_i32 = arith.constant 1 : i32
    %1 = arith.subi %0, %c1_i32 : i32
    %c0_i32 = arith.constant 0 : i32
    %2 = arith.maxsi %1, %c0_i32 : i32
    %c0_i32_0 = arith.constant 0 : i32
    %c0_i32_1 = arith.constant 0 : i32
    %c0_i32_2 = arith.constant 0 : i32
    return %arg0, %2, %c0_i32_0, %c0_i32_1 : i32, i32, i32, i32
  }
  func.func @transform_2(%arg0: i32, %arg1: i32) -> (i32, i32, i32, i32) {
    %c8_i32 = arith.constant 8 : i32
    %0 = arith.muli %arg1, %c8_i32 : i32
    %c8_i32_0 = arith.constant 8 : i32
    %1 = arith.addi %0, %c8_i32_0 : i32
    %c15_i32 = arith.constant 15 : i32
    %2 = arith.minsi %1, %c15_i32 : i32
    %c0_i32 = arith.constant 0 : i32
    %c0_i32_1 = arith.constant 0 : i32
    %c0_i32_2 = arith.constant 0 : i32
    return %arg0, %2, %c0_i32, %c0_i32_1 : i32, i32, i32, i32
  }
  func.func @transform_3(%arg0: i32, %arg1: i32) -> (i32, i32) {
    %c0_i32 = arith.constant 0 : i32
    %c0_i32_0 = arith.constant 0 : i32
    %c0_i32_1 = arith.constant 0 : i32
    return %c0_i32, %c0_i32_0 : i32, i32
  }
  func.func @transform_4(%arg0: i32, %arg1: i32) -> (i32, i32) {
    %c0_i32 = arith.constant 0 : i32
    %c0_i32_0 = arith.constant 0 : i32
    %c0_i32_1 = arith.constant 0 : i32
    return %c0_i32, %c0_i32_0 : i32, i32
  }
  func.func @transform_5(%arg0: i32, %arg1: i32) -> (i32, i32, i32) {
    %c0_i32 = arith.constant 0 : i32
    %c0_i32_0 = arith.constant 0 : i32
    %c0_i32_1 = arith.constant 0 : i32
    %c0_i32_2 = arith.constant 0 : i32
    return %c0_i32, %c0_i32_0, %c0_i32_1 : i32, i32, i32
  }
  func.func @transform_6(%arg0: i32, %arg1: i32) -> (i32, i32) {
    %c0_i32 = arith.constant 0 : i32
    %c0_i32_0 = arith.constant 0 : i32
    %c0_i32_1 = arith.constant 0 : i32
    return %c0_i32, %c0_i32_0 : i32, i32
  }
  func.func @transform_7(%arg0: i32, %arg1: i32) -> (i32, i32) {
    %c0_i32 = arith.constant 0 : i32
    %c0_i32_0 = arith.constant 0 : i32
    %c0_i32_1 = arith.constant 0 : i32
    return %c0_i32, %c0_i32_0 : i32, i32
  }
  func.func @transform_8(%arg0: i32, %arg1: i32) -> (i32, i32) {
    %c0_i32 = arith.constant 0 : i32
    %c0_i32_0 = arith.constant 0 : i32
    %c0_i32_1 = arith.constant 0 : i32
    return %c0_i32, %c0_i32_0 : i32, i32
  }
  func.func @transform_9(%arg0: i32, %arg1: i32) -> (i32, i32, i32, i32) {
    %c0_i32 = arith.constant 0 : i32
    %c0_i32_0 = arith.constant 0 : i32
    %c0_i32_1 = arith.constant 0 : i32
    return %arg0, %arg1, %c0_i32, %c0_i32_0 : i32, i32, i32, i32
  }
}

</mosaic_0001>

<llo_original>
// kernel: tpu_custom_call.1
$region0: #{tpu_custom_call.1}
  #allocation0 [shape = 'u32[]', space=smem, size = 0x4, offset = 0x4, fixed_abs, tag = 'smem constant byte address 0x4 - core index']
  #allocation1 [shape = 'u32[144,128]{1,0:T(1,128)}', space=vmem, size = 0x12000, scoped, tag = 'internal scratch']
  #allocation2 [shape = 'f32[10,8,128]{2,1,0:T(8,128)}', space=vmem, size = 0xa000, scoped, tag = 'scratch operand']
  %s0 = inlined_call_operand.hbm [shape: f32[2,16,8,128], index: 0, kind: input, shape index: {}]
  %s1 = inlined_call_operand.hbm [shape: f32[2,16,8,128], index: 1, kind: input, shape index: {}]
  %s2 = inlined_call_operand.hbm [shape: f32[2,16,8,128], index: 2, kind: input, shape index: {}]
  %s3 = inlined_call_operand.hbm [shape: bf16[128,128], index: 3, kind: input, shape index: {}]
  %s4 = inlined_call_operand.vmem [shape: f32[1,128], index: 4, kind: input, shape index: {}]
  %s5 = inlined_call_operand.hbm [shape: f32[3,3,128], index: 5, kind: input, shape index: {}]
  %s6 = inlined_call_operand.vmem [shape: f32[1,128], index: 6, kind: input, shape index: {}]
  %s7 = inlined_call_operand.hbm [shape: bf16[128,128], index: 7, kind: input, shape index: {}]
  %s8 = inlined_call_operand.vmem [shape: f32[1,128], index: 8, kind: input, shape index: {}]
  %s9 = inlined_call_operand.hbm [shape: f32[2,16,8,128], index: 9, kind: output, shape index: {}]
  %s10 = sld [smem:[#allocation0]]
  $region109: #{tpu_custom_call.1} parent=0
    _
  %s12 = ssub.s32 1, %s10
  %s13 = scalar_select 0, %s12, %s10
  $region1: #{tpu_custom_call.1} parent=0
    #allocation3 [shape = 'u8[65536]{0}', space=vmem, size = 0x10000, scoped, tag = 'input window, operand 0']
    #allocation4 [shape = 's32[2]{0}', space=sflag, size = 0x8, scoped, tag = 'scoped memory for tpu_custom_call.1']
    #allocation5 [shape = 's32[2]{0}', space=sflag, size = 0x8, scoped, tag = 'scoped memory for tpu_custom_call.1']
    #allocation6 [shape = 'u8[8192]{0}', space=vmem, size = 0x2000, scoped, tag = 'input window, operand 1']
    #allocation7 [shape = 's32[2]{0}', space=sflag, size = 0x8, scoped, tag = 'scoped memory for tpu_custom_call.1']
    #allocation8 [shape = 'u8[8192]{0}', space=vmem, size = 0x2000, scoped, tag = 'input window, operand 2']
    #allocation9 [shape = 'u8[32768]{0}', space=vmem, size = 0x8000, scoped, tag = 'input window, operand 3, single buffered']
    #allocation10 [shape = 's32[1]{0}', space=sflag, size = 0x4, scoped, tag = 'scoped memory for tpu_custom_call.1']
    #allocation11 [shape = 'u8[6144]{0}', space=vmem, size = 0x1800, scoped, tag = 'input window, operand 5, single buffered']
    #allocation12 [shape = 'u8[32768]{0}', space=vmem, size = 0x8000, scoped, tag = 'input window, operand 7, single buffered']
    #allocation13 [shape = 's32[1]{0}', space=sflag, size = 0x4, scoped, tag = 'scoped memory for tpu_custom_call.1']
    #allocation14 [shape = 'u8[65536]{0}', space=vmem, size = 0x10000, scoped, tag = 'output window, operand 0']
    %14 = vsyncpa [#allocation4], 0
    %s15 = scalar_lea.sflag [#allocation4], 1
    %16 = vsyncpa %s15, 0
    %17 = vsyncpa [#allocation7], 0
    %s18 = scalar_lea.sflag [#allocation7], 1
    %19 = vsyncpa %s18, 0
    %20 = vsyncpa [#allocation10], 0
    %21 = vsyncpa [#allocation13], 0
    %22 = vsyncpa [#allocation5], 0
    %s23 = scalar_lea.sflag [#allocation5], 1
    %24 = vsyncpa %s23, 0
    loop: start=0, step=1, limit=6
    $region2: #{tpu_custom_call.1} parent=1 // loop_pre_header
      _
    $region3: #{tpu_custom_call.1} parent=1 // loop_header
      %s26 = sphi 0, %s30
      %p27 = scmp.ge.s32.totalorder %s26, 6
      %s33 = sphi 0, %s45
      %s34 = sphi 0, %s41
      %s35 = sphi 0, %s33
      %s36 = sphi 0, %s34
      %s37 = sphi 0, %s35
      %s38 = sphi 0, %s36
      %s50 = sphi 0, %s52
      %s53 = sphi 0, %s50
      %s54 = sphi 0, %s53
      %s70 = sphi 0, %s54
      %s86 = sphi 0, %s88
      %s89 = sphi 0, %s86
      %s90 = sphi 0, %s89
      %s106 = sphi 0, %s90
      %s122 = sphi 0, %s124
      %s125 = sphi 0, %s122
      %s126 = sphi 0, %s125
      %s142 = sphi 0, %s126
      %s146 = sphi 0, %s146
      %s148 = sphi 0, %s146
      %s149 = sphi 0, %s148
      %s163 = sphi 0, %s149
      %s167 = sphi 0, %s167
      %s169 = sphi 0, %s167
      %s170 = sphi 0, %s169
      %s184 = sphi 0, %s170
      %s188 = sphi 0, %s188
      %s190 = sphi 0, %s188
      %s191 = sphi 0, %s190
      %s205 = sphi 0, %s191
      %s209 = sphi 0, %s209
      %s211 = sphi 0, %s209
      %s212 = sphi 0, %s211
      %s226 = sphi 0, %s212
      %s230 = sphi 0, %s230
      %s232 = sphi 0, %s230
      %s233 = sphi 0, %s232
      %s247 = sphi 0, %s233
      %s251 = sphi 0, %s251
      %s253 = sphi 0, %s251
      %s254 = sphi 0, %s253
      %s268 = sphi 0, %s254
      %s276 = sphi 0, %s278
      %s279 = sphi 0, %s276
      %s280 = sphi 0, %s279
      %s296 = sphi 0, %s280
    $region4: #{tpu_custom_call.1} parent=1 // loop_header_branch
      %29 = sbr.rel (%p27) target = $region8
    $region5: #{tpu_custom_call.1} parent=1 // loop_body
      %s31 = ssub.s32 %s26, 1
      %s32 = ssub.s32 %s26, 2
      %s39 = sadd.s32 1, %s34
      %p40 = scmp.ge.s32.totalorder %s39, 2
      %s41 = scalar_select %p40, 0, %s39
      %s42 = sadd.s32 1, %s33
      %s43 = scalar_select %p40, %s42, %s33
      %p44 = scmp.ge.s32.totalorder %s43, 2
      %s45 = scalar_select %p44, 0, %s43
      %s46 = ssub.s32 %s33, %s45
      %s47 = ssub.s32 %s34, %s41
      %s48 = sor.u32 %s46, %s47
      %p49 = scmp.eq.s32.totalorder %s48, 0
      %s51 = sadd.s32 %s50, 1
      %s52 = scalar_select %p49, %s50, %s51
      %p55 = pneg %p49
      %p56 = scmp.eq.s32.totalorder %s26, 3
      %p57 = por %p55, %p56
      %p58 = scmp.ne.s32.totalorder %s50, %s53
      %p59 = scmp.eq.s32.totalorder %s26, 0
      %p60 = por %p58, %p59
      %p61 = scmp.ne.s32.totalorder %s50, %s53
      %p62 = scmp.eq.s32.totalorder %s31, 3
      %p63 = por %p61, %p62
      %p64 = scmp.ne.s32.totalorder %s53, %s54
      %p65 = scmp.eq.s32.totalorder %s31, 0
      %p66 = por %p64, %p65
      %p67 = scmp.ne.s32.totalorder %s53, %s54
      %p68 = scmp.eq.s32.totalorder %s32, 3
      %p69 = por %p67, %p68
      %p71 = scmp.ne.s32.totalorder %s54, %s70
      %p72 = scmp.eq.s32.totalorder %s32, 0
      %p73 = por %p71, %p72
      %s74 = smul.u32 %s34, 8
      %s75 = ssub.s32 %s74, 1
      %p76 = scmp.gt.s32.totalorder %s75, 0
      %s77 = scalar_select %p76, %s75, 0
      %s78 = smul.u32 %s41, 8
      %s79 = ssub.s32 %s78, 1
      %p80 = scmp.gt.s32.totalorder %s79, 0
      %s81 = scalar_select %p80, %s79, 0
      %s82 = ssub.s32 %s33, %s45
      %s83 = ssub.s32 %s77, %s81
      %s84 = sor.u32 %s82, %s83
      %p85 = scmp.eq.s32.totalorder %s84, 0
      %s87 = sadd.s32 %s86, 1
      %s88 = scalar_select %p85, %s86, %s87
      %p91 = pneg %p85
      %p92 = scmp.eq.s32.totalorder %s26, 3
      %p93 = por %p91, %p92
      %p94 = scmp.ne.s32.totalorder %s86, %s89
      %p95 = scmp.eq.s32.totalorder %s26, 0
      %p96 = por %p94, %p95
      %p97 = scmp.ne.s32.totalorder %s86, %s89
      %p98 = scmp.eq.s32.totalorder %s31, 3
      %p99 = por %p97, %p98
      %p100 = scmp.ne.s32.totalorder %s89, %s90
      %p101 = scmp.eq.s32.totalorder %s31, 0
      %p102 = por %p100, %p101
      %p103 = scmp.ne.s32.totalorder %s89, %s90
      %p104 = scmp.eq.s32.totalorder %s32, 3
      %p105 = por %p103, %p104
      %p107 = scmp.ne.s32.totalorder %s90, %s106
      %p108 = scmp.eq.s32.totalorder %s32, 0
      %p109 = por %p107, %p108
      %s110 = smul.u32 %s34, 8
      %s111 = sadd.s32 %s110, 8
      %p112 = scmp.lt.s32.totalorder %s111, 15
      %s113 = scalar_select %p112, %s111, 15
      %s114 = smul.u32 %s41, 8
      %s115 = sadd.s32 %s114, 8
      %p116 = scmp.lt.s32.totalorder %s115, 15
      %s117 = scalar_select %p116, %s115, 15
      %s118 = ssub.s32 %s33, %s45
      %s119 = ssub.s32 %s113, %s117
      %s120 = sor.u32 %s118, %s119
      %p121 = scmp.eq.s32.totalorder %s120, 0
      %s123 = sadd.s32 %s122, 1
      %s124 = scalar_select %p121, %s122, %s123
      %p127 = pneg %p121
      %p128 = scmp.eq.s32.totalorder %s26, 3
      %p129 = por %p127, %p128
      %p130 = scmp.ne.s32.totalorder %s122, %s125
      %p131 = scmp.eq.s32.totalorder %s26, 0
      %p132 = por %p130, %p131
      %p133 = scmp.ne.s32.totalorder %s122, %s125
      %p134 = scmp.eq.s32.totalorder %s31, 3
      %p135 = por %p133, %p134
      %p136 = scmp.ne.s32.totalorder %s125, %s126
      %p137 = scmp.eq.s32.totalorder %s31, 0
      %p138 = por %p136, %p137
      %p139 = scmp.ne.s32.totalorder %s125, %s126
      %p140 = scmp.eq.s32.totalorder %s32, 3
      %p141 = por %p139, %p140
      %p143 = scmp.ne.s32.totalorder %s126, %s142
      %p144 = scmp.eq.s32.totalorder %s32, 0
      %p145 = por %p143, %p144
      %s147 = sadd.s32 %s146, 1
      %p150 = scmp.eq.s32.totalorder %s26, 3
      %p151 = scmp.ne.s32.totalorder %s146, %s148
      %p152 = scmp.eq.s32.totalorder %s26, 0
      %p153 = por %p151, %p152
      %p154 = scmp.ne.s32.totalorder %s146, %s148
      %p155 = scmp.eq.s32.totalorder %s31, 3
      %p156 = por %p154, %p155
      %p157 = scmp.ne.s32.totalorder %s148, %s149
      %p158 = scmp.eq.s32.totalorder %s31, 0
      %p159 = por %p157, %p158
      %p160 = scmp.ne.s32.totalorder %s148, %s149
      %p161 = scmp.eq.s32.totalorder %s32, 3
      %p162 = por %p160, %p161
      %p164 = scmp.ne.s32.totalorder %s149, %s163
      %p165 = scmp.eq.s32.totalorder %s32, 0
      %p166 = por %p164, %p165
      %s168 = sadd.s32 %s167, 1
      %p171 = scmp.eq.s32.totalorder %s26, 3
      %p172 = scmp.ne.s32.totalorder %s167, %s169
      %p173 = scmp.eq.s32.totalorder %s26, 0
      %p174 = por %p172, %p173
      %p175 = scmp.ne.s32.totalorder %s167, %s169
      %p176 = scmp.eq.s32.totalorder %s31, 3
      %p177 = por %p175, %p176
      %p178 = scmp.ne.s32.totalorder %s169, %s170
      %p179 = scmp.eq.s32.totalorder %s31, 0
      %p180 = por %p178, %p179
      %p181 = scmp.ne.s32.totalorder %s169, %s170
      %p182 = scmp.eq.s32.totalorder %s32, 3
      %p183 = por %p181, %p182
      %p185 = scmp.ne.s32.totalorder %s170, %s184
      %p186 = scmp.eq.s32.totalorder %s32, 0
      %p187 = por %p185, %p186
      %s189 = sadd.s32 %s188, 1
      %p192 = scmp.eq.s32.totalorder %s26, 3
      %p193 = scmp.ne.s32.totalorder %s188, %s190
      %p194 = scmp.eq.s32.totalorder %s26, 0
      %p195 = por %p193, %p194
      %p196 = scmp.ne.s32.totalorder %s188, %s190
      %p197 = scmp.eq.s32.totalorder %s31, 3
      %p198 = por %p196, %p197
      %p199 = scmp.ne.s32.totalorder %s190, %s191
      %p200 = scmp.eq.s32.totalorder %s31, 0
      %p201 = por %p199, %p200
      %p202 = scmp.ne.s32.totalorder %s190, %s191
      %p203 = scmp.eq.s32.totalorder %s32, 3
      %p204 = por %p202, %p203
      %p206 = scmp.ne.s32.totalorder %s191, %s205
      %p207 = scmp.eq.s32.totalorder %s32, 0
      %p208 = por %p206, %p207
      %s210 = sadd.s32 %s209, 1
      %p213 = scmp.eq.s32.totalorder %s26, 3
      %p214 = scmp.ne.s32.totalorder %s209, %s211
      %p215 = scmp.eq.s32.totalorder %s26, 0
      %p216 = por %p214, %p215
      %p217 = scmp.ne.s32.totalorder %s209, %s211
      %p218 = scmp.eq.s32.totalorder %s31, 3
      %p219 = por %p217, %p218
      %p220 = scmp.ne.s32.totalorder %s211, %s212
      %p221 = scmp.eq.s32.totalorder %s31, 0
      %p222 = por %p220, %p221
      %p223 = scmp.ne.s32.totalorder %s211, %s212
      %p224 = scmp.eq.s32.totalorder %s32, 3
      %p225 = por %p223, %p224
      %p227 = scmp.ne.s32.totalorder %s212, %s226
      %p228 = scmp.eq.s32.totalorder %s32, 0
      %p229 = por %p227, %p228
      %s231 = sadd.s32 %s230, 1
      %p234 = scmp.eq.s32.totalorder %s26, 3
      %p235 = scmp.ne.s32.totalorder %s230, %s232
      %p236 = scmp.eq.s32.totalorder %s26, 0
      %p237 = por %p235, %p236
      %p238 = scmp.ne.s32.totalorder %s230, %s232
      %p239 = scmp.eq.s32.totalorder %s31, 3
      %p240 = por %p238, %p239
      %p241 = scmp.ne.s32.totalorder %s232, %s233
      %p242 = scmp.eq.s32.totalorder %s31, 0
      %p243 = por %p241, %p242
      %p244 = scmp.ne.s32.totalorder %s232, %s233
      %p245 = scmp.eq.s32.totalorder %s32, 3
      %p246 = por %p244, %p245
      %p248 = scmp.ne.s32.totalorder %s233, %s247
      %p249 = scmp.eq.s32.totalorder %s32, 0
      %p250 = por %p248, %p249
      %s252 = sadd.s32 %s251, 1
      %p255 = scmp.eq.s32.totalorder %s26, 3
      %p256 = scmp.ne.s32.totalorder %s251, %s253
      %p257 = scmp.eq.s32.totalorder %s26, 0
      %p258 = por %p256, %p257
      %p259 = scmp.ne.s32.totalorder %s251, %s253
      %p260 = scmp.eq.s32.totalorder %s31, 3
      %p261 = por %p259, %p260
      %p262 = scmp.ne.s32.totalorder %s253, %s254
      %p263 = scmp.eq.s32.totalorder %s31, 0
      %p264 = por %p262, %p263
      %p265 = scmp.ne.s32.totalorder %s253, %s254
      %p266 = scmp.eq.s32.totalorder %s32, 3
      %p267 = por %p265, %p266
      %p269 = scmp.ne.s32.totalorder %s254, %s268
      %p270 = scmp.eq.s32.totalorder %s32, 0
      %p271 = por %p269, %p270
      %s272 = ssub.s32 %s33, %s45
      %s273 = ssub.s32 %s34, %s41
      %s274 = sor.u32 %s272, %s273
      %p275 = scmp.eq.s32.totalorder %s274, 0
      %s277 = sadd.s32 %s276, 1
      %s278 = scalar_select %p275, %s276, %s277
      %p281 = pneg %p275
      %p282 = scmp.eq.s32.totalorder %s26, 3
      %p283 = por %p281, %p282
      %p284 = scmp.ne.s32.totalorder %s276, %s279
      %p285 = scmp.eq.s32.totalorder %s26, 0
      %p286 = por %p284, %p285
      %p287 = scmp.ne.s32.totalorder %s276, %s279
      %p288 = scmp.eq.s32.totalorder %s31, 3
      %p289 = por %p287, %p288
      %p290 = scmp.ne.s32.totalorder %s279, %s280
      %p291 = scmp.eq.s32.totalorder %s31, 0
      %p292 = por %p290, %p291
      %p293 = scmp.ne.s32.totalorder %s279, %s280
      %p294 = scmp.eq.s32.totalorder %s32, 3
      %p295 = por %p293, %p294
      %p297 = scmp.ne.s32.totalorder %s280, %s296
      %p298 = scmp.eq.s32.totalorder %s32, 0
      %p299 = por %p297, %p298
      %p300 = scmp.le.s32.totalorder 1, %s26
      %p301 = scmp.lt.s32.totalorder %s26, 5
      %p302 = pnand %p300, %p301
      %p303 = pneg %p302
      // Predicated region
      $region9: #{tpu_custom_call.1} parent=5 // pred_check
        _
      $region10: #{tpu_custom_call.1} parent=5 // pred_check_branch
        %305 = sbr.rel (%p302) target = $region12
      $region11: #{tpu_custom_call.1} parent=5 // pred_region
        %s306 = ssub.s32 %s26, 1
        // Predicated region
        $region13: #{tpu_custom_call.1} parent=11 // pred_check
          %p307 = pneg %p159
        $region14: #{tpu_custom_call.1} parent=11 // pred_check_branch
          %309 = sbr.rel (%p307) target = $region16
        $region15: #{tpu_custom_call.1} parent=11 // pred_region
          %s311 = ssub.s32 1024, 1024
          %312 = vsyncadd [#allocation10], %s311
          %s313 = sshll.u32 [#allocation9], 4
          %s314 = int_to_ptr.vmem [resolvable:$true] %s313
          %319 = dma.hbm_to_vmem [thread:$0]  %s3, 1024, %s314, [#allocation10], 64, 64, 4
        $region16: #{tpu_custom_call.1} parent=11 // pred_fallthru
          _
        // Predicated region
        $region17: #{tpu_custom_call.1} parent=11 // pred_check
          %p320 = pneg %p180
        $region18: #{tpu_custom_call.1} parent=11 // pred_check_branch
          %322 = sbr.rel (%p320) target = $region20
        $region19: #{tpu_custom_call.1} parent=11 // pred_region
          _
        $region20: #{tpu_custom_call.1} parent=11 // pred_fallthru
          _
        // Predicated region
        $region21: #{tpu_custom_call.1} parent=11 // pred_check
          %p323 = pneg %p201
        $region22: #{tpu_custom_call.1} parent=11 // pred_check_branch
          %325 = sbr.rel (%p323) target = $region24
        $region23: #{tpu_custom_call.1} parent=11 // pred_region
          %s327 = ssub.s32 192, 192
          %328 = vsyncadd [#allocation10], %s327
          %s329 = sshll.u32 [#allocation11], 4
          %s330 = int_to_ptr.vmem [resolvable:$true] %s329
          %335 = dma.hbm_to_vmem [thread:$0]  %s5, 192, %s330, [#allocation10], 64, 64, 4
        $region24: #{tpu_custom_call.1} parent=11 // pred_fallthru
          _
        // Predicated region
        $region25: #{tpu_custom_call.1} parent=11 // pred_check
          %p336 = pneg %p222
        $region26: #{tpu_custom_call.1} parent=11 // pred_check_branch
          %338 = sbr.rel (%p336) target = $region28
        $region27: #{tpu_custom_call.1} parent=11 // pred_region
          _
        $region28: #{tpu_custom_call.1} parent=11 // pred_fallthru
          _
        // Predicated region
        $region29: #{tpu_custom_call.1} parent=11 // pred_check
          %p339 = pneg %p243
        $region30: #{tpu_custom_call.1} parent=11 // pred_check_branch
          %341 = sbr.rel (%p339) target = $region32
        $region31: #{tpu_custom_call.1} parent=11 // pred_region
          %s343 = ssub.s32 1024, 1024
          %344 = vsyncadd [#allocation13], %s343
          %s345 = sshll.u32 [#allocation12], 4
          %s346 = int_to_ptr.vmem [resolvable:$true] %s345
          %351 = dma.hbm_to_vmem [thread:$0]  %s7, 1024, %s346, [#allocation13], 64, 64, 4
        $region32: #{tpu_custom_call.1} parent=11 // pred_fallthru
          _
        // Predicated region
        $region33: #{tpu_custom_call.1} parent=11 // pred_check
          %p352 = pneg %p264
        $region34: #{tpu_custom_call.1} parent=11 // pred_check_branch
          %354 = sbr.rel (%p352) target = $region36
        $region35: #{tpu_custom_call.1} parent=11 // pred_region
          _
        $region36: #{tpu_custom_call.1} parent=11 // pred_fallthru
          _
      $region12: #{tpu_custom_call.1} parent=5 // pred_fallthru
        _
      %p355 = scmp.lt.s32.totalorder %s26, 4
      // Predicated region
      $region37: #{tpu_custom_call.1} parent=5 // pred_check
        %p356 = pneg %p355
      $region38: #{tpu_custom_call.1} parent=5 // pred_check_branch
        %358 = sbr.rel (%p356) target = $region40
      $region39: #{tpu_custom_call.1} parent=5 // pred_region
        // Predicated region
        $region41: #{tpu_custom_call.1} parent=39 // pred_check
          %p359 = pneg %p60
        $region42: #{tpu_custom_call.1} parent=39 // pred_check_branch
          %361 = sbr.rel (%p359) target = $region44
        $region43: #{tpu_custom_call.1} parent=39 // pred_region
          %s362 = sand.u32 %s50, 1
          %s363 = scalar_lea.sflag [#allocation4], %s362
          %s364 = sand.u32 %s50, 1
          %s365 = smul.addr %s364, 64
          %s366 = scalar_lea.vmem [#allocation3], %s365
          %s367 = smul.u32 8, %s34
          %s369 = ssub.s32 1024, 1024
          %370 = vsyncadd %s363, %s369
          %s371 = smul.addr %s33, 16
          %s372 = sadd.s32 %s367, %s371
          %s373 = smul.addr %s372, 128
          %s374 = scalar_lea.hbm %s0, %s373
          %s375 = sshll.u32 %s366, 4
          %s376 = int_to_ptr.vmem [resolvable:$true] %s375
          %381 = dma.hbm_to_vmem [thread:$0]  %s374, 1024, %s376, %s363, 128, 128, 8
        $region44: #{tpu_custom_call.1} parent=39 // pred_fallthru
          _
        // Predicated region
        $region45: #{tpu_custom_call.1} parent=39 // pred_check
          %p382 = pneg %p96
        $region46: #{tpu_custom_call.1} parent=39 // pred_check_branch
          %384 = sbr.rel (%p382) target = $region48
        $region47: #{tpu_custom_call.1} parent=39 // pred_region
          %s385 = sand.u32 %s26, 1
          %s386 = scalar_lea.sflag [#allocation7], %s385
          %s387 = sand.u32 %s86, 1
          %s388 = smul.addr %s387, 8
          %s389 = scalar_lea.vmem [#allocation6], %s388
          %s390 = smul.u32 %s34, 8
          %s391 = ssub.s32 %s390, 1
          %p392 = scmp.gt.s32.totalorder %s391, 0
          %s393 = scalar_select %p392, %s391, 0
          %s395 = ssub.s32 128, 128
          %396 = vsyncadd %s386, %s395
          %s397 = smul.addr %s33, 16
          %s398 = sadd.s32 %s393, %s397
          %s399 = smul.addr %s398, 128
          %s400 = scalar_lea.hbm %s1, %s399
          %s402 = sshll.u32 %s389, 4
          %s403 = int_to_ptr.vmem [resolvable:$true] %s402
          %405 = dma.hbm_to_vmem [thread:$0]  %s400, 128, %s403, %s386
        $region48: #{tpu_custom_call.1} parent=39 // pred_fallthru
          _
        // Predicated region
        $region49: #{tpu_custom_call.1} parent=39 // pred_check
          %p406 = pneg %p132
        $region50: #{tpu_custom_call.1} parent=39 // pred_check_branch
          %408 = sbr.rel (%p406) target = $region52
        $region51: #{tpu_custom_call.1} parent=39 // pred_region
          %s409 = sand.u32 %s26, 1
          %s410 = scalar_lea.sflag [#allocation7], %s409
          %s411 = sand.u32 %s122, 1
          %s412 = smul.addr %s411, 8
          %s413 = scalar_lea.vmem [#allocation8], %s412
          %s414 = smul.u32 %s34, 8
          %s415 = sadd.s32 %s414, 8
          %p416 = scmp.lt.s32.totalorder %s415, 15
          %s417 = scalar_select %p416, %s415, 15
          %s419 = ssub.s32 128, 128
          %420 = vsyncadd %s410, %s419
          %s421 = smul.addr %s33, 16
          %s422 = sadd.s32 %s417, %s421
          %s423 = smul.addr %s422, 128
          %s424 = scalar_lea.hbm %s2, %s423
          %s426 = sshll.u32 %s413, 4
          %s427 = int_to_ptr.vmem [resolvable:$true] %s426
          %429 = dma.hbm_to_vmem [thread:$0]  %s424, 128, %s427, %s410
        $region52: #{tpu_custom_call.1} parent=39 // pred_fallthru
          _
      $region40: #{tpu_custom_call.1} parent=5 // pred_fallthru
        _
      %p430 = scmp.le.s32.totalorder 1, %s26
      %p431 = scmp.lt.s32.totalorder %s26, 5
      %p432 = pnand %p430, %p431
      %p433 = pneg %p432
      // Predicated region
      $region53: #{tpu_custom_call.1} parent=5 // pred_check
        _
      $region54: #{tpu_custom_call.1} parent=5 // pred_check_branch
        %435 = sbr.rel (%p432) target = $region56
      $region55: #{tpu_custom_call.1} parent=5 // pred_region
        %s436 = ssub.s32 %s26, 1
        %s437 = sand.u32 %s53, 1
        %s438 = scalar_lea.sflag [#allocation4], %s437
        %s439 = sand.u32 %s53, 1
        %s440 = smul.addr %s439, 64
        %s441 = scalar_lea.vmem [#allocation3], %s440
        // Predicated region
        $region57: #{tpu_custom_call.1} parent=55 // pred_check
          %p442 = pneg %p66
        $region58: #{tpu_custom_call.1} parent=55 // pred_check_branch
          %444 = sbr.rel (%p442) target = $region60
        $region59: #{tpu_custom_call.1} parent=55 // pred_region
          %445 = dma.done %s438, 1024
        $region60: #{tpu_custom_call.1} parent=55 // pred_fallthru
          _
        %s446 = sand.u32 %s31, 1
        %s447 = scalar_lea.sflag [#allocation7], %s446
        %s448 = sand.u32 %s89, 1
        %s449 = smul.addr %s448, 8
        %s450 = scalar_lea.vmem [#allocation6], %s449
        // Predicated region
        $region61: #{tpu_custom_call.1} parent=55 // pred_check
          %p451 = pneg %p102
        $region62: #{tpu_custom_call.1} parent=55 // pred_check_branch
          %453 = sbr.rel (%p451) target = $region64
        $region63: #{tpu_custom_call.1} parent=55 // pred_region
          %454 = dma.done %s447, 128
        $region64: #{tpu_custom_call.1} parent=55 // pred_fallthru
          _
        %s455 = sand.u32 %s31, 1
        %s456 = scalar_lea.sflag [#allocation7], %s455
        %s457 = sand.u32 %s125, 1
        %s458 = smul.addr %s457, 8
        %s459 = scalar_lea.vmem [#allocation8], %s458
        // Predicated region
        $region65: #{tpu_custom_call.1} parent=55 // pred_check
          %p460 = pneg %p138
        $region66: #{tpu_custom_call.1} parent=55 // pred_check_branch
          %462 = sbr.rel (%p460) target = $region68
        $region67: #{tpu_custom_call.1} parent=55 // pred_region
          %463 = dma.done %s456, 128
        $region68: #{tpu_custom_call.1} parent=55 // pred_fallthru
          _
        // Predicated region
        $region69: #{tpu_custom_call.1} parent=55 // pred_check
          %p464 = pneg %p159
        $region70: #{tpu_custom_call.1} parent=55 // pred_check_branch
          %466 = sbr.rel (%p464) target = $region72
        $region71: #{tpu_custom_call.1} parent=55 // pred_region
          %467 = dma.done [#allocation10], 1024
        $region72: #{tpu_custom_call.1} parent=55 // pred_fallthru
          _
        // Predicated region
        $region73: #{tpu_custom_call.1} parent=55 // pred_check
          %p468 = pneg %p201
        $region74: #{tpu_custom_call.1} parent=55 // pred_check_branch
          %470 = sbr.rel (%p468) target = $region76
        $region75: #{tpu_custom_call.1} parent=55 // pred_region
          %471 = dma.done [#allocation10], 192
        $region76: #{tpu_custom_call.1} parent=55 // pred_fallthru
          _
        // Predicated region
        $region77: #{tpu_custom_call.1} parent=55 // pred_check
          %p472 = pneg %p243
        $region78: #{tpu_custom_call.1} parent=55 // pred_check_branch
          %474 = sbr.rel (%p472) target = $region80
        $region79: #{tpu_custom_call.1} parent=55 // pred_region
          %475 = dma.done [#allocation13], 1024
        $region80: #{tpu_custom_call.1} parent=55 // pred_fallthru
          _
        %s476 = sand.u32 %s53, 1
        %s477 = scalar_lea.sflag [#allocation4], %s476
        %s478 = sand.u32 %s53, 1
        %s479 = smul.addr %s478, 64
        %s480 = scalar_lea.vmem [#allocation3], %s479
        %p481 = pneg %p66
        %p482 = pneg %p63
        %s483 = sand.u32 %s31, 1
        %s484 = scalar_lea.sflag [#allocation7], %s483
        %s485 = sand.u32 %s89, 1
        %s486 = smul.addr %s485, 8
        %s487 = scalar_lea.vmem [#allocation6], %s486
        %p488 = pneg %p102
        %p489 = pneg %p99
        %s490 = sand.u32 %s31, 1
        %s491 = scalar_lea.sflag [#allocation7], %s490
        %s492 = sand.u32 %s125, 1
        %s493 = smul.addr %s492, 8
        %s494 = scalar_lea.vmem [#allocation8], %s493
        %p495 = pneg %p138
        %p496 = pneg %p135
        %p497 = pneg %p159
        %p498 = pneg %p156
        %p499 = pneg %p180
        %p500 = pneg %p177
        %p501 = pneg %p201
        %p502 = pneg %p198
        %p503 = pneg %p222
        %p504 = pneg %p219
        %p505 = pneg %p243
        %p506 = pneg %p240
        %p507 = pneg %p264
        %p508 = pneg %p261
        %p509 = pneg %p292
        %p510 = pneg %p289
        %s511 = sand.u32 %s279, 1
        %s512 = scalar_lea.sflag [#allocation5], %s511
        %s513 = sand.u32 %s279, 1
        %s514 = smul.addr %s513, 64
        %s515 = scalar_lea.vmem [#allocation14], %s514
        %s516 = smul.u32 8, %s36
        %s517 = smul.u32 %s36, 8
        %s518 = ssub.s32 %s517, 1
        %p519 = scmp.gt.s32.totalorder %s518, 0
        %s520 = scalar_select %p519, %s518, 0
        %s521 = smul.u32 %s36, 8
        %s522 = sadd.s32 %s521, 8
        %p523 = scmp.lt.s32.totalorder %s522, 15
        %s524 = scalar_select %p523, %s522, 15
        %s525 = smul.u32 8, %s36
        %v527 = vld [vmem:[#allocation9] sm:$0xf]
        %v528 = vld [vmem:[#allocation9 + $0x4] sm:$0xf]
        %v529 = vld [vmem:[#allocation9 + $0x8] sm:$0xf]
        %v530 = vld [vmem:[#allocation9 + $0xc] sm:$0xf]
        %v531 = vld [vmem:[#allocation9 + $0x10] sm:$0xf]
        %v532 = vld [vmem:[#allocation9 + $0x14] sm:$0xf]
        %v533 = vld [vmem:[#allocation9 + $0x18] sm:$0xf]
        %v534 = vld [vmem:[#allocation9 + $0x1c] sm:$0xf]
        %v535 = vld [vmem:[#allocation9 + $0x20] sm:$0xf]
        %v536 = vld [vmem:[#allocation9 + $0x24] sm:$0xf]
        %v537 = vld [vmem:[#allocation9 + $0x28] sm:$0xf]
        %v538 = vld [vmem:[#allocation9 + $0x2c] sm:$0xf]
        %v539 = vld [vmem:[#allocation9 + $0x30] sm:$0xf]
        %v540 = vld [vmem:[#allocation9 + $0x34] sm:$0xf]
        %v541 = vld [vmem:[#allocation9 + $0x38] sm:$0xf]
        %v542 = vld [vmem:[#allocation9 + $0x3c] sm:$0xf]
        %v543 = vld [vmem:[%s4] sm:$0x1]
        %v544 = vld [vmem:[%s441] sm:$0xff]
        %v545 = vld [vmem:[%s441 + $0x8] sm:$0xff]
        %v546 = vld [vmem:[%s441 + $0x10] sm:$0xff]
        %v547 = vld [vmem:[%s441 + $0x18] sm:$0xff]
        %v548 = vld [vmem:[%s441 + $0x20] sm:$0xff]
        %v549 = vld [vmem:[%s441 + $0x28] sm:$0xff]
        %v550 = vld [vmem:[%s441 + $0x30] sm:$0xff]
        %v551 = vld [vmem:[%s441 + $0x38] sm:$0xff]
        %v552 = vpack.c.bf16 %v545, %v544
        %v553 = vpack.c.bf16 %v547, %v546
        %v554 = vpack.c.bf16 %v549, %v548
        %v555 = vpack.c.bf16 %v551, %v550
        %v557 = vlaneseq
        %v558 = vshrl.u32 %v557, 7
        %v559 = vsub.s32 0, %v558
        %v560 = vrot.slane %v543, %v559
        %v578 = vunpack.c.l.b16 %v527
        %v579 = vunpack.c.l.b16 %v528
        %v580 = vunpack.c.l.b16 %v529
        %v581 = vunpack.c.l.b16 %v530
        %v582 = vunpack.c.l.b16 %v531
        %v583 = vunpack.c.l.b16 %v532
        %v584 = vunpack.c.l.b16 %v533
        %v585 = vunpack.c.l.b16 %v534
        %v586 = vunpack.c.l.b16 %v535
        %v587 = vunpack.c.l.b16 %v536
        %v588 = vunpack.c.l.b16 %v537
        %v589 = vunpack.c.l.b16 %v538
        %v590 = vunpack.c.l.b16 %v539
        %v591 = vunpack.c.l.b16 %v540
        %v592 = vunpack.c.l.b16 %v541
        %v593 = vunpack.c.l.b16 %v542
        %v594 = vpack.c.b16 %v579, %v578
        %v595 = vpack.c.b16 %v581, %v580
        %v596 = vpack.c.b16 %v583, %v582
        %v597 = vpack.c.b16 %v585, %v584
        %v598 = vpack.c.b16 %v587, %v586
        %v599 = vpack.c.b16 %v589, %v588
        %v600 = vpack.c.b16 %v591, %v590
        %v601 = vpack.c.b16 %v593, %v592
        %610 = vmatprep.subr.bf16.mxu0 0
        %611 = vmatpush1.bf16.msra.mxu0 %v601
        %612 = vmatprep.subr.bf16.mxu0 0
        %613 = vmatpush1.bf16.msra.mxu0 %v600
        %614 = vmatprep.subr.bf16.mxu0 0
        %615 = vmatpush1.bf16.msra.mxu0 %v599
        %616 = vmatprep.subr.bf16.mxu0 0
        %617 = vmatpush1.bf16.msra.mxu0 %v598
        %618 = vmatprep.subr.bf16.mxu0 0
        %619 = vmatpush1.bf16.msra.mxu0 %v597
        %620 = vmatprep.subr.bf16.mxu0 0
        %621 = vmatpush1.bf16.msra.mxu0 %v596
        %622 = vmatprep.subr.bf16.mxu0 0
        %623 = vmatpush1.bf16.msra.mxu0 %v595
        %624 = vmatprep.subr.bf16.mxu0 0
        %625 = vmatpush1.bf16.msra.mxu0 %v594
        %626 = vmatprep.subr.bf16.mxu0 0
        %627 = vmatpush2.bf16.msra.mxu0 0
        %628 = vmatprep.subr.bf16.mxu0 0
        %629 = vmatpush2.bf16.msra.mxu0 0
        %630 = vmatprep.subr.bf16.mxu0 0
        %631 = vmatpush2.bf16.msra.mxu0 0
        %632 = vmatprep.subr.bf16.mxu0 0
        %633 = vmatpush2.bf16.msra.mxu0 0
        %634 = vmatprep.subr.bf16.mxu0 0
        %635 = vmatpush2.bf16.msra.mxu0 0
        %636 = vmatprep.subr.bf16.mxu0 0
        %637 = vmatpush2.bf16.msra.mxu0 0
        %638 = vmatprep.subr.bf16.mxu0 0
        %639 = vmatpush2.bf16.msra.mxu0 0
        %640 = vmatprep.subr.bf16.mxu0 0
        %641 = vmatpush2.bf16.msra.mxu0 0
        %642 = vmatprep.mubr.bf16.mxu0 0
        %643 = vmatmul.mubr.bf16.gmra.mxu0 %v552
        %v644 = vpop.f32.mrf.mxu0
        %v645 = vadd.f32 %v560, %v644
        %v646 = vpop.f32.mrf.mxu0
        %v647 = vpop.f32.mrf.mxu0
        %v648 = vadd.f32 %v560, %v647
        %v649 = vpop.f32.mrf.mxu0
        %650 = vmatprep.mubr.bf16.mxu0 0
        %651 = vmatmul.mubr.bf16.gmra.mxu0 %v553
        %v652 = vpop.f32.mrf.mxu0
        %v653 = vadd.f32 %v560, %v652
        %v654 = vpop.f32.mrf.mxu0
        %v655 = vpop.f32.mrf.mxu0
        %v656 = vadd.f32 %v560, %v655
        %v657 = vpop.f32.mrf.mxu0
        %658 = vmatprep.mubr.bf16.mxu0 0
        %659 = vmatmul.mubr.bf16.gmra.mxu0 %v554
        %v660 = vpop.f32.mrf.mxu0
        %v661 = vadd.f32 %v560, %v660
        %v662 = vpop.f32.mrf.mxu0
        %v663 = vpop.f32.mrf.mxu0
        %v664 = vadd.f32 %v560, %v663
        %v665 = vpop.f32.mrf.mxu0
        %666 = vmatprep.mubr.bf16.mxu0 0
        %667 = vmatmul.mubr.bf16.gmra.mxu0 %v555
        %v668 = vpop.f32.mrf.mxu0
        %v669 = vadd.f32 %v560, %v668
        %v670 = vpop.f32.mrf.mxu0
        %v671 = vpop.f32.mrf.mxu0
        %v672 = vadd.f32 %v560, %v671
        %v673 = vpop.f32.mrf.mxu0
        %674 = vdwg.mxu0
        %s675 = scalar_lea.vmem [#allocation2], 8
        %676 = vst [vmem:[%s675] sm:$0xff] %v645
        %677 = vst [vmem:[%s675 + $0x8] sm:$0xff] %v648
        %678 = vst [vmem:[%s675 + $0x10] sm:$0xff] %v653
        %679 = vst [vmem:[%s675 + $0x18] sm:$0xff] %v656
        %680 = vst [vmem:[%s675 + $0x20] sm:$0xff] %v661
        %681 = vst [vmem:[%s675 + $0x28] sm:$0xff] %v664
        %682 = vst [vmem:[%s675 + $0x30] sm:$0xff] %v669
        %683 = vst [vmem:[%s675 + $0x38] sm:$0xff] %v672
        %p684 = scmp.gt.s32.totalorder %s36, 0
        // Predicated region
        $region81: #{tpu_custom_call.1} parent=55 // pred_check
          %p685 = pneg %p684
        $region82: #{tpu_custom_call.1} parent=55 // pred_check_branch
          %687 = sbr.rel (%p685) target = $region84
        $region83: #{tpu_custom_call.1} parent=55 // pred_region
          %v688 = vld [vmem:[%s450] sm:$0xff]
          %v689 = vpack.c.bf16 %v688, %v688
          %690 = vmatprep.subr.bf16.mxu0 0
          %691 = vmatpush1.bf16.msra.mxu0 %v601
          %692 = vmatprep.subr.bf16.mxu0 0
          %693 = vmatpush1.bf16.msra.mxu0 %v600
          %694 = vmatprep.subr.bf16.mxu0 0
          %695 = vmatpush1.bf16.msra.mxu0 %v599
          %696 = vmatprep.subr.bf16.mxu0 0
          %697 = vmatpush1.bf16.msra.mxu0 %v598
          %698 = vmatprep.subr.bf16.mxu0 0
          %699 = vmatpush1.bf16.msra.mxu0 %v597
          %700 = vmatprep.subr.bf16.mxu0 0
          %701 = vmatpush1.bf16.msra.mxu0 %v596
          %702 = vmatprep.subr.bf16.mxu0 0
          %703 = vmatpush1.bf16.msra.mxu0 %v595
          %704 = vmatprep.subr.bf16.mxu0 0
          %705 = vmatpush1.bf16.msra.mxu0 %v594
          %706 = vmatprep.subr.bf16.mxu0 0
          %707 = vmatpush2.bf16.msra.mxu0 0
          %708 = vmatprep.subr.bf16.mxu0 0
          %709 = vmatpush2.bf16.msra.mxu0 0
          %710 = vmatprep.subr.bf16.mxu0 0
          %711 = vmatpush2.bf16.msra.mxu0 0
          %712 = vmatprep.subr.bf16.mxu0 0
          %713 = vmatpush2.bf16.msra.mxu0 0
          %714 = vmatprep.subr.bf16.mxu0 0
          %715 = vmatpush2.bf16.msra.mxu0 0
          %716 = vmatprep.subr.bf16.mxu0 0
          %717 = vmatpush2.bf16.msra.mxu0 0
          %718 = vmatprep.subr.bf16.mxu0 0
          %719 = vmatpush2.bf16.msra.mxu0 0
          %720 = vmatprep.subr.bf16.mxu0 0
          %721 = vmatpush2.bf16.msra.mxu0 0
          %722 = vmatprep.mubr.bf16.mxu0 0
          %723 = vmatmul.mubr.bf16.gmra.mxu0 %v689
          %v724 = vpop.f32.mrf.mxu0
          %v725 = vadd.f32 %v560, %v724
          %v726 = vpop.f32.mrf.mxu0
          %v727 = vpop.f32.mrf.mxu0
          %v728 = vpop.f32.mrf.mxu0
          %729 = vdwg.mxu0
          %730 = vst [vmem:[#allocation2] sm:$0xff] %v725
        $region84: #{tpu_custom_call.1} parent=55 // pred_fallthru
          _
        %p731 = scmp.eq.s32.totalorder %s36, 0
        // Predicated region
        $region85: #{tpu_custom_call.1} parent=55 // pred_check
          %p732 = pneg %p731
        $region86: #{tpu_custom_call.1} parent=55 // pred_check_branch
          %734 = sbr.rel (%p732) target = $region88
        $region87: #{tpu_custom_call.1} parent=55 // pred_region
          %735 = vst [vmem:[#allocation2] sm:$0xff] 0.0
        $region88: #{tpu_custom_call.1} parent=55 // pred_fallthru
          _
        %p736 = scmp.lt.s32.totalorder %s36, 1
        // Predicated region
        $region89: #{tpu_custom_call.1} parent=55 // pred_check
          %p737 = pneg %p736
        $region90: #{tpu_custom_call.1} parent=55 // pred_check_branch
          %739 = sbr.rel (%p737) target = $region92
        $region91: #{tpu_custom_call.1} parent=55 // pred_region
          %v740 = vld [vmem:[%s459] sm:$0xff]
          %v741 = vpack.c.bf16 %v740, %v740
          %742 = vmatprep.subr.bf16.mxu0 0
          %743 = vmatpush1.bf16.msra.mxu0 %v601
          %744 = vmatprep.subr.bf16.mxu0 0
          %745 = vmatpush1.bf16.msra.mxu0 %v600
          %746 = vmatprep.subr.bf16.mxu0 0
          %747 = vmatpush1.bf16.msra.mxu0 %v599
          %748 = vmatprep.subr.bf16.mxu0 0
          %749 = vmatpush1.bf16.msra.mxu0 %v598
          %750 = vmatprep.subr.bf16.mxu0 0
          %751 = vmatpush1.bf16.msra.mxu0 %v597
          %752 = vmatprep.subr.bf16.mxu0 0
          %753 = vmatpush1.bf16.msra.mxu0 %v596
          %754 = vmatprep.subr.bf16.mxu0 0
          %755 = vmatpush1.bf16.msra.mxu0 %v595
          %756 = vmatprep.subr.bf16.mxu0 0
          %757 = vmatpush1.bf16.msra.mxu0 %v594
          %758 = vmatprep.subr.bf16.mxu0 0
          %759 = vmatpush2.bf16.msra.mxu0 0
          %760 = vmatprep.subr.bf16.mxu0 0
          %761 = vmatpush2.bf16.msra.mxu0 0
          %762 = vmatprep.subr.bf16.mxu0 0
          %763 = vmatpush2.bf16.msra.mxu0 0
          %764 = vmatprep.subr.bf16.mxu0 0
          %765 = vmatpush2.bf16.msra.mxu0 0
          %766 = vmatprep.subr.bf16.mxu0 0
          %767 = vmatpush2.bf16.msra.mxu0 0
          %768 = vmatprep.subr.bf16.mxu0 0
          %769 = vmatpush2.bf16.msra.mxu0 0
          %770 = vmatprep.subr.bf16.mxu0 0
          %771 = vmatpush2.bf16.msra.mxu0 0
          %772 = vmatprep.subr.bf16.mxu0 0
          %773 = vmatpush2.bf16.msra.mxu0 0
          %774 = vmatprep.mubr.bf16.mxu0 0
          %775 = vmatmul.mubr.bf16.gmra.mxu0 %v741
          %v776 = vpop.f32.mrf.mxu0
          %v777 = vadd.f32 %v560, %v776
          %v778 = vpop.f32.mrf.mxu0
          %v779 = vpop.f32.mrf.mxu0
          %v780 = vpop.f32.mrf.mxu0
          %781 = vdwg.mxu0
          %s782 = scalar_lea.vmem [#allocation2], 72
          %783 = vst [vmem:[%s782] sm:$0xff] %v777
        $region92: #{tpu_custom_call.1} parent=55 // pred_fallthru
          _
        %p784 = scmp.eq.s32.totalorder %s36, 1
        // Predicated region
        $region93: #{tpu_custom_call.1} parent=55 // pred_check
          %p785 = pneg %p784
        $region94: #{tpu_custom_call.1} parent=55 // pred_check_branch
          %787 = sbr.rel (%p785) target = $region96
        $region95: #{tpu_custom_call.1} parent=55 // pred_region
          %s788 = scalar_lea.vmem [#allocation2], 72
          %789 = vst [vmem:[%s788] sm:$0xff] 0.0
        $region96: #{tpu_custom_call.1} parent=55 // pred_fallthru
          _
        %v790 = vld [vmem:[#allocation11] sm:$0x7]
        %v791 = vld [vmem:[#allocation11 + $0x4] sm:$0x7]
        %v792 = vld [vmem:[#allocation11 + $0x8] sm:$0x7]
        %v793 = vld [vmem:[#allocation2] sm:$0xff]
        %v794 = vld [vmem:[#allocation2 + $0x8] sm:$0xff]
        %v795 = vld [vmem:[#allocation2 + $0x10] sm:$0xff]
        %v796 = vld [vmem:[#allocation2 + $0x18] sm:$0xff]
        %v797 = vld [vmem:[#allocation2 + $0x20] sm:$0xff]
        %v798 = vld [vmem:[#allocation2 + $0x28] sm:$0xff]
        %v799 = vld [vmem:[#allocation2 + $0x30] sm:$0xff]
        %v800 = vld [vmem:[#allocation2 + $0x38] sm:$0xff]
        %v801 = vlaneseq
        %v802 = vshrl.u32 %v801, 7
        %v803 = vsub.s32 0, %v802
        %v804 = vrot.slane %v790, %v803
        %v805 = vmul.f32 %v793, %v804
        %v806 = vmul.f32 %v794, %v804
        %v807 = vmul.f32 %v795, %v804
        %v808 = vmul.f32 %v796, %v804
        %v809 = vmul.f32 %v797, %v804
        %v810 = vmul.f32 %v798, %v804
        %v811 = vmul.f32 %v799, %v804
        %v812 = vmul.f32 %v800, %v804
        %v813 = vlaneseq
        %v814 = vshrl.u32 %v813, 7
        %v815 = vsub.s32 1, %v814
        %v816 = vrot.slane %v790, %v815
        %v817 = vmul.f32 %v793, %v816
        %v818 = vmul.f32 %v794, %v816
        %v819 = vmul.f32 %v795, %v816
        %v820 = vmul.f32 %v796, %v816
        %v821 = vmul.f32 %v797, %v816
        %v822 = vmul.f32 %v798, %v816
        %v823 = vmul.f32 %v799, %v816
        %v824 = vmul.f32 %v800, %v816
        %v825 = vlaneseq
        %v826 = vshrl.u32 %v825, 7
        %v827 = vsub.s32 2, %v826
        %v828 = vrot.slane %v790, %v827
        %v829 = vmul.f32 %v793, %v828
        %v830 = vmul.f32 %v794, %v828
        %v831 = vmul.f32 %v795, %v828
        %v832 = vmul.f32 %v796, %v828
        %v833 = vmul.f32 %v797, %v828
        %v834 = vmul.f32 %v798, %v828
        %v835 = vmul.f32 %v799, %v828
        %v836 = vmul.f32 %v800, %v828
        %v837 = vld [vmem:[%s675] sm:$0xff]
        %v838 = vld [vmem:[%s675 + $0x8] sm:$0xff]
        %v839 = vld [vmem:[%s675 + $0x10] sm:$0xff]
        %v840 = vld [vmem:[%s675 + $0x18] sm:$0xff]
        %v841 = vld [vmem:[%s675 + $0x20] sm:$0xff]
        %v842 = vld [vmem:[%s675 + $0x28] sm:$0xff]
        %v843 = vld [vmem:[%s675 + $0x30] sm:$0xff]
        %v844 = vld [vmem:[%s675 + $0x38] sm:$0xff]
        %v845 = vlaneseq
        %v846 = vshrl.u32 %v845, 7
        %v847 = vsub.s32 0, %v846
        %v848 = vrot.slane %v791, %v847
        %v849 = vmul.f32 %v837, %v848
        %v850 = vmul.f32 %v838, %v848
        %v851 = vmul.f32 %v839, %v848
        %v852 = vmul.f32 %v840, %v848
        %v853 = vmul.f32 %v841, %v848
        %v854 = vmul.f32 %v842, %v848
        %v855 = vmul.f32 %v843, %v848
        %v856 = vmul.f32 %v844, %v848
        %v857 = vlaneseq
        %v858 = vshrl.u32 %v857, 7
        %v859 = vsub.s32 1, %v858
        %v860 = vrot.slane %v791, %v859
        %v861 = vmul.f32 %v837, %v860
        %v862 = vmul.f32 %v838, %v860
        %v863 = vmul.f32 %v839, %v860
        %v864 = vmul.f32 %v840, %v860
        %v865 = vmul.f32 %v841, %v860
        %v866 = vmul.f32 %v842, %v860
        %v867 = vmul.f32 %v843, %v860
        %v868 = vmul.f32 %v844, %v860
        %v869 = vlaneseq
        %v870 = vshrl.u32 %v869, 7
        %v871 = vsub.s32 2, %v870
        %v872 = vrot.slane %v791, %v871
        %v873 = vmul.f32 %v837, %v872
        %v874 = vmul.f32 %v838, %v872
        %v875 = vmul.f32 %v839, %v872
        %v876 = vmul.f32 %v840, %v872
        %v877 = vmul.f32 %v841, %v872
        %v878 = vmul.f32 %v842, %v872
        %v879 = vmul.f32 %v843, %v872
        %v880 = vmul.f32 %v844, %v872
        %v881 = vadd.f32 %v805, %v849
        %v882 = vadd.f32 %v806, %v850
        %v883 = vadd.f32 %v807, %v851
        %v884 = vadd.f32 %v808, %v852
        %v885 = vadd.f32 %v809, %v853
        %v886 = vadd.f32 %v810, %v854
        %v887 = vadd.f32 %v811, %v855
        %v888 = vadd.f32 %v812, %v856
        %v889 = vadd.f32 %v817, %v861
        %v890 = vadd.f32 %v818, %v862
        %v891 = vadd.f32 %v819, %v863
        %v892 = vadd.f32 %v820, %v864
        %v893 = vadd.f32 %v821, %v865
        %v894 = vadd.f32 %v822, %v866
        %v895 = vadd.f32 %v823, %v867
        %v896 = vadd.f32 %v824, %v868
        %v897 = vadd.f32 %v829, %v873
        %v898 = vadd.f32 %v830, %v874
        %v899 = vadd.f32 %v831, %v875
        %v900 = vadd.f32 %v832, %v876
        %v901 = vadd.f32 %v833, %v877
        %v902 = vadd.f32 %v834, %v878
        %v903 = vadd.f32 %v835, %v879
        %v904 = vadd.f32 %v836, %v880
        %s905 = scalar_lea.vmem [#allocation2], 16
        %v906 = vld [vmem:[%s905] sm:$0xff]
        %v907 = vld [vmem:[%s905 + $0x8] sm:$0xff]
        %v908 = vld [vmem:[%s905 + $0x10] sm:$0xff]
        %v909 = vld [vmem:[%s905 + $0x18] sm:$0xff]
        %v910 = vld [vmem:[%s905 + $0x20] sm:$0xff]
        %v911 = vld [vmem:[%s905 + $0x28] sm:$0xff]
        %v912 = vld [vmem:[%s905 + $0x30] sm:$0xff]
        %v913 = vld [vmem:[%s905 + $0x38] sm:$0xff]
        %v914 = vlaneseq
        %v915 = vshrl.u32 %v914, 7
        %v916 = vsub.s32 0, %v915
        %v917 = vrot.slane %v792, %v916
        %v918 = vmul.f32 %v906, %v917
        %v919 = vmul.f32 %v907, %v917
        %v920 = vmul.f32 %v908, %v917
        %v921 = vmul.f32 %v909, %v917
        %v922 = vmul.f32 %v910, %v917
        %v923 = vmul.f32 %v911, %v917
        %v924 = vmul.f32 %v912, %v917
        %v925 = vmul.f32 %v913, %v917
        %v926 = vlaneseq
        %v927 = vshrl.u32 %v926, 7
        %v928 = vsub.s32 1, %v927
        %v929 = vrot.slane %v792, %v928
        %v930 = vmul.f32 %v906, %v929
        %v931 = vmul.f32 %v907, %v929
        %v932 = vmul.f32 %v908, %v929
        %v933 = vmul.f32 %v909, %v929
        %v934 = vmul.f32 %v910, %v929
        %v935 = vmul.f32 %v911, %v929
        %v936 = vmul.f32 %v912, %v929
        %v937 = vmul.f32 %v913, %v929
        %v938 = vlaneseq
        %v939 = vshrl.u32 %v938, 7
        %v940 = vsub.s32 2, %v939
        %v941 = vrot.slane %v792, %v940
        %v942 = vmul.f32 %v906, %v941
        %v943 = vmul.f32 %v907, %v941
        %v944 = vmul.f32 %v908, %v941
        %v945 = vmul.f32 %v909, %v941
        %v946 = vmul.f32 %v910, %v941
        %v947 = vmul.f32 %v911, %v941
        %v948 = vmul.f32 %v912, %v941
        %v949 = vmul.f32 %v913, %v941
        %v950 = vadd.f32 %v881, %v918
        %v951 = vadd.f32 %v882, %v919
        %v952 = vadd.f32 %v883, %v920
        %v953 = vadd.f32 %v884, %v921
        %v954 = vadd.f32 %v885, %v922
        %v955 = vadd.f32 %v886, %v923
        %v956 = vadd.f32 %v887, %v924
        %v957 = vadd.f32 %v888, %v925
        %v958 = vadd.f32 %v889, %v930
        %v959 = vadd.f32 %v890, %v931
        %v960 = vadd.f32 %v891, %v932
        %v961 = vadd.f32 %v892, %v933
        %v962 = vadd.f32 %v893, %v934
        %v963 = vadd.f32 %v894, %v935
        %v964 = vadd.f32 %v895, %v936
        %v965 = vadd.f32 %v896, %v937
        %v966 = vadd.f32 %v897, %v942
        %v967 = vadd.f32 %v898, %v943
        %v968 = vadd.f32 %v899, %v944
        %v969 = vadd.f32 %v900, %v945
        %v970 = vadd.f32 %v901, %v946
        %v971 = vadd.f32 %v902, %v947
        %v972 = vadd.f32 %v903, %v948
        %v973 = vadd.f32 %v904, %v949
        %v982 = vrot.slane %v950, 7
        %v983 = vrot.slane %v951, 7
        %v984 = vrot.slane %v952, 7
        %v985 = vrot.slane %v953, 7
        %v986 = vrot.slane %v954, 7
        %v987 = vrot.slane %v955, 7
        %v988 = vrot.slane %v956, 7
        %v989 = vrot.slane %v957, 7
        %vm998 = vcmask 1040384
        %v999 = vsel %vm998, 0.0, %v982
        %v1000 = vsel %vm998, 0.0, %v983
        %v1001 = vsel %vm998, 0.0, %v984
        %v1002 = vsel %vm998, 0.0, %v985
        %v1003 = vsel %vm998, 0.0, %v986
        %v1004 = vsel %vm998, 0.0, %v987
        %v1005 = vsel %vm998, 0.0, %v988
        %v1006 = vsel %vm998, 0.0, %v989
        %v1015 = vrot.slane %v966, 1
        %v1016 = vrot.slane %v967, 1
        %v1017 = vrot.slane %v968, 1
        %v1018 = vrot.slane %v969, 1
        %v1019 = vrot.slane %v970, 1
        %v1020 = vrot.slane %v971, 1
        %v1021 = vrot.slane %v972, 1
        %v1022 = vrot.slane %v973, 1
        %vm1031 = vcmask 1046528
        %v1032 = vsel %vm1031, %v1015, 0.0
        %v1033 = vsel %vm1031, %v1016, 0.0
        %v1034 = vsel %vm1031, %v1017, 0.0
        %v1035 = vsel %vm1031, %v1018, 0.0
        %v1036 = vsel %vm1031, %v1019, 0.0
        %v1037 = vsel %vm1031, %v1020, 0.0
        %v1038 = vsel %vm1031, %v1021, 0.0
        %v1039 = vsel %vm1031, %v1022, 0.0
        %v1040 = vadd.f32 %v958, %v999
        %v1041 = vadd.f32 %v959, %v1000
        %v1042 = vadd.f32 %v960, %v1001
        %v1043 = vadd.f32 %v961, %v1002
        %v1044 = vadd.f32 %v962, %v1003
        %v1045 = vadd.f32 %v963, %v1004
        %v1046 = vadd.f32 %v964, %v1005
        %v1047 = vadd.f32 %v965, %v1006
        %v1048 = vadd.f32 %v1040, %v1032
        %v1049 = vadd.f32 %v1041, %v1033
        %v1050 = vadd.f32 %v1042, %v1034
        %v1051 = vadd.f32 %v1043, %v1035
        %v1052 = vadd.f32 %v1044, %v1036
        %v1053 = vadd.f32 %v1045, %v1037
        %v1054 = vadd.f32 %v1046, %v1038
        %v1055 = vadd.f32 %v1047, %v1039
        %v1056 = vld [vmem:[%s6] sm:$0x1]
        %v1058 = vlaneseq
        %v1059 = vshrl.u32 %v1058, 7
        %v1060 = vsub.s32 0, %v1059
        %v1061 = vrot.slane %v1056, %v1060
        %v1063 = vadd.f32 %v1048, %v1061
        %v1064 = vadd.f32 %v1049, %v1061
        %v1065 = vadd.f32 %v1050, %v1061
        %v1066 = vadd.f32 %v1051, %v1061
        %v1067 = vadd.f32 %v1052, %v1061
        %v1068 = vadd.f32 %v1053, %v1061
        %v1069 = vadd.f32 %v1054, %v1061
        %v1070 = vadd.f32 %v1055, %v1061
        %v1071 = vmul.f32 %v1063, 0.5
        %v1072 = vmul.f32 %v1064, 0.5
        %v1073 = vmul.f32 %v1065, 0.5
        %v1074 = vmul.f32 %v1066, 0.5
        %v1075 = vmul.f32 %v1067, 0.5
        %v1076 = vmul.f32 %v1068, 0.5
        %v1077 = vmul.f32 %v1069, 0.5
        %v1078 = vmul.f32 %v1070, 0.5
        %v1079 = vmul.f32 %v1063, 0.70710677
        %v1080 = vmul.f32 %v1064, 0.70710677
        %v1081 = vmul.f32 %v1065, 0.70710677
        %v1082 = vmul.f32 %v1066, 0.70710677
        %v1083 = vmul.f32 %v1067, 0.70710677
        %v1084 = vmul.f32 %v1068, 0.70710677
        %v1085 = vmul.f32 %v1069, 0.70710677
        %v1086 = vmul.f32 %v1070, 0.70710677
        %v1087 = verf.f32.pop %v1079
        %v1088 = verf.f32.pop %v1080
        %v1089 = verf.f32.pop %v1081
        %v1090 = verf.f32.pop %v1082
        %v1091 = verf.f32.pop %v1083
        %v1092 = verf.f32.pop %v1084
        %v1093 = verf.f32.pop %v1085
        %v1094 = verf.f32.pop %v1086
        %v1095 = vadd.f32 %v1087, 1.0
        %v1096 = vadd.f32 %v1088, 1.0
        %v1097 = vadd.f32 %v1089, 1.0
        %v1098 = vadd.f32 %v1090, 1.0
        %v1099 = vadd.f32 %v1091, 1.0
        %v1100 = vadd.f32 %v1092, 1.0
        %v1101 = vadd.f32 %v1093, 1.0
        %v1102 = vadd.f32 %v1094, 1.0
        %v1103 = vmul.f32 %v1071, %v1095
        %v1104 = vmul.f32 %v1072, %v1096
        %v1105 = vmul.f32 %v1073, %v1097
        %v1106 = vmul.f32 %v1074, %v1098
        %v1107 = vmul.f32 %v1075, %v1099
        %v1108 = vmul.f32 %v1076, %v1100
        %v1109 = vmul.f32 %v1077, %v1101
        %v1110 = vmul.f32 %v1078, %v1102
        %v1111 = vpack.c.bf16 %v1104, %v1103
        %v1112 = vpack.c.bf16 %v1106, %v1105
        %v1113 = vpack.c.bf16 %v1108, %v1107
        %v1114 = vpack.c.bf16 %v1110, %v1109
        %v1115 = vld [vmem:[#allocation12] sm:$0xf]
        %v1116 = vld [vmem:[#allocation12 + $0x4] sm:$0xf]
        %v1117 = vld [vmem:[#allocation12 + $0x8] sm:$0xf]
        %v1118 = vld [vmem:[#allocation12 + $0xc] sm:$0xf]
        %v1119 = vld [vmem:[#allocation12 + $0x10] sm:$0xf]
        %v1120 = vld [vmem:[#allocation12 + $0x14] sm:$0xf]
        %v1121 = vld [vmem:[#allocation12 + $0x18] sm:$0xf]
        %v1122 = vld [vmem:[#allocation12 + $0x1c] sm:$0xf]
        %v1123 = vld [vmem:[#allocation12 + $0x20] sm:$0xf]
        %v1124 = vld [vmem:[#allocation12 + $0x24] sm:$0xf]
        %v1125 = vld [vmem:[#allocation12 + $0x28] sm:$0xf]
        %v1126 = vld [vmem:[#allocation12 + $0x2c] sm:$0xf]
        %v1127 = vld [vmem:[#allocation12 + $0x30] sm:$0xf]
        %v1128 = vld [vmem:[#allocation12 + $0x34] sm:$0xf]
        %v1129 = vld [vmem:[#allocation12 + $0x38] sm:$0xf]
        %v1130 = vld [vmem:[#allocation12 + $0x3c] sm:$0xf]
        %v1131 = vld [vmem:[%s8] sm:$0x1]
        %v1133 = vlaneseq
        %v1134 = vshrl.u32 %v1133, 7
        %v1135 = vsub.s32 0, %v1134
        %v1136 = vrot.slane %v1131, %v1135
        %v1154 = vunpack.c.l.b16 %v1115
        %v1155 = vunpack.c.l.b16 %v1116
        %v1156 = vunpack.c.l.b16 %v1117
        %v1157 = vunpack.c.l.b16 %v1118
        %v1158 = vunpack.c.l.b16 %v1119
        %v1159 = vunpack.c.l.b16 %v1120
        %v1160 = vunpack.c.l.b16 %v1121
        %v1161 = vunpack.c.l.b16 %v1122
        %v1162 = vunpack.c.l.b16 %v1123
        %v1163 = vunpack.c.l.b16 %v1124
        %v1164 = vunpack.c.l.b16 %v1125
        %v1165 = vunpack.c.l.b16 %v1126
        %v1166 = vunpack.c.l.b16 %v1127
        %v1167 = vunpack.c.l.b16 %v1128
        %v1168 = vunpack.c.l.b16 %v1129
        %v1169 = vunpack.c.l.b16 %v1130
        %v1170 = vpack.c.b16 %v1155, %v1154
        %v1171 = vpack.c.b16 %v1157, %v1156
        %v1172 = vpack.c.b16 %v1159, %v1158
        %v1173 = vpack.c.b16 %v1161, %v1160
        %v1174 = vpack.c.b16 %v1163, %v1162
        %v1175 = vpack.c.b16 %v1165, %v1164
        %v1176 = vpack.c.b16 %v1167, %v1166
        %v1177 = vpack.c.b16 %v1169, %v1168
        %1186 = vmatprep.subr.bf16.mxu0 0
        %1187 = vmatpush1.bf16.msra.mxu0 %v1177
        %1188 = vmatprep.subr.bf16.mxu0 0
        %1189 = vmatpush1.bf16.msra.mxu0 %v1176
        %1190 = vmatprep.subr.bf16.mxu0 0
        %1191 = vmatpush1.bf16.msra.mxu0 %v1175
        %1192 = vmatprep.subr.bf16.mxu0 0
        %1193 = vmatpush1.bf16.msra.mxu0 %v1174
        %1194 = vmatprep.subr.bf16.mxu0 0
        %1195 = vmatpush1.bf16.msra.mxu0 %v1173
        %1196 = vmatprep.subr.bf16.mxu0 0
        %1197 = vmatpush1.bf16.msra.mxu0 %v1172
        %1198 = vmatprep.subr.bf16.mxu0 0
        %1199 = vmatpush1.bf16.msra.mxu0 %v1171
        %1200 = vmatprep.subr.bf16.mxu0 0
        %1201 = vmatpush1.bf16.msra.mxu0 %v1170
        %1202 = vmatprep.subr.bf16.mxu0 0
        %1203 = vmatpush2.bf16.msra.mxu0 0
        %1204 = vmatprep.subr.bf16.mxu0 0
        %1205 = vmatpush2.bf16.msra.mxu0 0
        %1206 = vmatprep.subr.bf16.mxu0 0
        %1207 = vmatpush2.bf16.msra.mxu0 0
        %1208 = vmatprep.subr.bf16.mxu0 0
        %1209 = vmatpush2.bf16.msra.mxu0 0
        %1210 = vmatprep.subr.bf16.mxu0 0
        %1211 = vmatpush2.bf16.msra.mxu0 0
        %1212 = vmatprep.subr.bf16.mxu0 0
        %1213 = vmatpush2.bf16.msra.mxu0 0
        %1214 = vmatprep.subr.bf16.mxu0 0
        %1215 = vmatpush2.bf16.msra.mxu0 0
        %1216 = vmatprep.subr.bf16.mxu0 0
        %1217 = vmatpush2.bf16.msra.mxu0 0
        %1218 = vmatprep.mubr.bf16.mxu0 0
        %1219 = vmatmul.mubr.bf16.gmra.mxu0 %v1111
        %v1220 = vpop.f32.mrf.mxu0
        %v1221 = vadd.f32 %v1136, %v1220
        %v1222 = vpop.f32.mrf.mxu0
        %v1223 = vpop.f32.mrf.mxu0
        %v1224 = vadd.f32 %v1136, %v1223
        %v1225 = vpop.f32.mrf.mxu0
        %1226 = vmatprep.mubr.bf16.mxu0 0
        %1227 = vmatmul.mubr.bf16.gmra.mxu0 %v1112
        %v1228 = vpop.f32.mrf.mxu0
        %v1229 = vadd.f32 %v1136, %v1228
        %v1230 = vpop.f32.mrf.mxu0
        %v1231 = vpop.f32.mrf.mxu0
        %v1232 = vadd.f32 %v1136, %v1231
        %v1233 = vpop.f32.mrf.mxu0
        %1234 = vmatprep.mubr.bf16.mxu0 0
        %1235 = vmatmul.mubr.bf16.gmra.mxu0 %v1113
        %v1236 = vpop.f32.mrf.mxu0
        %v1237 = vadd.f32 %v1136, %v1236
        %v1238 = vpop.f32.mrf.mxu0
        %v1239 = vpop.f32.mrf.mxu0
        %v1240 = vadd.f32 %v1136, %v1239
        %v1241 = vpop.f32.mrf.mxu0
        %1242 = vmatprep.mubr.bf16.mxu0 0
        %1243 = vmatmul.mubr.bf16.gmra.mxu0 %v1114
        %v1244 = vpop.f32.mrf.mxu0
        %v1245 = vadd.f32 %v1136, %v1244
        %v1246 = vpop.f32.mrf.mxu0
        %v1247 = vpop.f32.mrf.mxu0
        %v1248 = vadd.f32 %v1136, %v1247
        %v1249 = vpop.f32.mrf.mxu0
        %1250 = vdwg.mxu0
        %1251 = vst [vmem:[%s515] sm:$0xff] %v1221
        %1252 = vst [vmem:[%s515 + $0x8] sm:$0xff] %v1224
        %1253 = vst [vmem:[%s515 + $0x10] sm:$0xff] %v1229
        %1254 = vst [vmem:[%s515 + $0x18] sm:$0xff] %v1232
        %1255 = vst [vmem:[%s515 + $0x20] sm:$0xff] %v1237
        %1256 = vst [vmem:[%s515 + $0x28] sm:$0xff] %v1240
        %1257 = vst [vmem:[%s515 + $0x30] sm:$0xff] %v1245
        %1258 = vst [vmem:[%s515 + $0x38] sm:$0xff] %v1248
        %s1259 = sand.u32 %s279, 1
        %s1260 = scalar_lea.sflag [#allocation5], %s1259
        %s1261 = sand.u32 %s279, 1
        %s1262 = smul.addr %s1261, 64
        %s1263 = scalar_lea.vmem [#allocation14], %s1262
        // Predicated region
        $region97: #{tpu_custom_call.1} parent=55 // pred_check
          %p1264 = pneg %p289
        $region98: #{tpu_custom_call.1} parent=55 // pred_check_branch
          %1266 = sbr.rel (%p1264) target = $region100
        $region99: #{tpu_custom_call.1} parent=55 // pred_region
          %s1267 = smul.u32 8, %s36
          %s1269 = ssub.s32 1024, 1024
          %1270 = vsyncadd %s1260, %s1269
          %s1271 = smul.addr %s35, 16
          %s1272 = sadd.s32 %s1267, %s1271
          %s1273 = smul.addr %s1272, 128
          %s1274 = scalar_lea.hbm %s9, %s1273
          %s1275 = sshll.u32 %s1263, 4
          %s1276 = int_to_ptr.vmem [resolvable:$true] %s1275
          %1281 = dma.vmem_to_hbm [thread:$0]  %s1276, 1024, %s1274, %s1260, 128, 128, 8
        $region100: #{tpu_custom_call.1} parent=55 // pred_fallthru
          _
      $region56: #{tpu_custom_call.1} parent=5 // pred_fallthru
        _
      %p1282 = scmp.le.s32.totalorder 2, %s26
      // Predicated region
      $region101: #{tpu_custom_call.1} parent=5 // pred_check
        %p1283 = pneg %p1282
      $region102: #{tpu_custom_call.1} parent=5 // pred_check_branch
        %1285 = sbr.rel (%p1283) target = $region104
      $region103: #{tpu_custom_call.1} parent=5 // pred_region
        %s1286 = ssub.s32 %s26, 2
        // Predicated region
        $region105: #{tpu_custom_call.1} parent=103 // pred_check
          %p1287 = pneg %p295
        $region106: #{tpu_custom_call.1} parent=103 // pred_check_branch
          %1289 = sbr.rel (%p1287) target = $region108
        $region107: #{tpu_custom_call.1} parent=103 // pred_region
          %s1290 = sand.u32 %s280, 1
          %s1291 = scalar_lea.sflag [#allocation5], %s1290
          %s1292 = sand.u32 %s280, 1
          %s1293 = smul.addr %s1292, 64
          %s1294 = scalar_lea.vmem [#allocation14], %s1293
          %1295 = dma.done %s1291, 1024
        $region108: #{tpu_custom_call.1} parent=103 // pred_fallthru
          _
      $region104: #{tpu_custom_call.1} parent=5 // pred_fallthru
        _
    $region6: #{tpu_custom_call.1} parent=1 // loop_footer
      %s30 = sadd.s32 1, %s26
    $region7: #{tpu_custom_call.1} parent=1 // loop_footer_branch
      %25 = sbr.rel target = $region3
    $region8: #{tpu_custom_call.1} parent=1 // loop_exit
      _
    %1296 = vsyncpa [#allocation4], 1
    %s1297 = scalar_lea.sflag [#allocation4], 1
    %1298 = vsyncpa %s1297, 1
    %1299 = vsyncpa [#allocation7], 1
    %s1300 = scalar_lea.sflag [#allocation7], 1
    %1301 = vsyncpa %s1300, 1
    %1302 = vsyncpa [#allocation10], 1
    %1303 = vsyncpa [#allocation13], 1
    %1304 = vsyncpa [#allocation5], 1
    %s1305 = scalar_lea.sflag [#allocation5], 1
    %1306 = vsyncpa %s1305, 1

</llo_original>
